<compile_context>
chip_gen: v7x
topology: tpu7x:2x2x1
jax: 0.10.0
libtpu: 0.0.40
codegen_flags: <defaults>
</compile_context>

<pallas_src>
import functools

import numpy as np
import jax
import jax.numpy as jnp
from jax.experimental import pallas as pl
from jax.experimental.pallas import tpu as pltpu


# ----------------------------- Pallas kernels ------------------------------ #

def _attn_core_kernel(x_ref, wq_ref, bq_ref, wk_ref, bk_ref, wv_ref, bv_ref,
                      cos_ref, sin_ref, ctx_ref, k_scr, v_scr,
                      *, q_tile, head_dim, is_causal, mxu_dtype):
    """Grid (B, H, QT): one head's attention context for one query tile."""
    qi = pl.program_id(2)
    half = head_dim // 2

    def rotate_half(t):
        # [a | b] -> [b | a] lane swap (would be pltpu.roll(t, half, axis=1)).
        return jnp.concatenate([t[:, half:], t[:, :half]], axis=-1)

    def rope(t, c, s):
        # Rotate-half RoPE; the sign is folded into the signed sin table.
        return t * c + rotate_half(t) * s

    # ---- fill the per-(batch, head) K / V caches once, at the first q tile --
    @pl.when(qi == 0)
    def _fill_kv():
        x_full = x_ref[0].astype(mxu_dtype)                       # (S, E)
        k = jnp.dot(x_full, wk_ref[0],
                    preferred_element_type=jnp.float32) + bk_ref[0]
        v = jnp.dot(x_full, wv_ref[0],
                    preferred_element_type=jnp.float32) + bv_ref[0]
        k_scr[...] = rope(k, cos_ref[...], sin_ref[...]).astype(k_scr.dtype)
        v_scr[...] = v.astype(v_scr.dtype)

    # ---- this query tile ---------------------------------------------------
    q_start = qi * q_tile
    x_q = x_ref[0, pl.ds(q_start, q_tile), :].astype(mxu_dtype)    # (TQ, E)
    q = jnp.dot(x_q, wq_ref[0],
                preferred_element_type=jnp.float32) + bq_ref[0]    # (TQ, D) f32
    qh = rope(q, cos_ref[pl.ds(q_start, q_tile), :],
              sin_ref[pl.ds(q_start, q_tile), :]).astype(mxu_dtype)

    # scores = qh @ K^T  (1/sqrt(D) already folded into wq/bq), f32 accumulate.
    scores = jax.lax.dot_general(qh, k_scr[...], (((1,), (1,)), ((), ())),
                                 preferred_element_type=jnp.float32)  # (TQ, S)

    if is_causal:
        rows = jax.lax.broadcasted_iota(jnp.int32, scores.shape, 0) + q_start
        cols = jax.lax.broadcasted_iota(jnp.int32, scores.shape, 1)
        scores = jnp.where(cols > rows, jnp.float32(-1e30), scores)
        # TODO(synk): clamp the key extent per q tile (flash-style KV tiling)
        # instead of masking full (q_tile, S) scores.

    scores = scores - jnp.max(scores, axis=-1, keepdims=True)
    p = jnp.exp(scores)
    p = p / jnp.sum(p, axis=-1, keepdims=True)      # exact (review note)

    ctx = jax.lax.dot_general(p.astype(mxu_dtype), v_scr[...],
                              (((1,), (0,)), ((), ())),
                              preferred_element_type=jnp.float32)     # (TQ, D)
    ctx_ref[0] = ctx.astype(ctx_ref.dtype)


def _out_proj_kernel(ctx_ref, wo_ref, bo_ref, o_ref, *, mxu_dtype):
    """Grid (B, row tiles): out = ctx_concat @ Wo^T + bo as one big GEMM."""
    y = jnp.dot(ctx_ref[0].astype(mxu_dtype), wo_ref[...],
                preferred_element_type=jnp.float32) + bo_ref[...]
    o_ref[0] = y.astype(o_ref.dtype)


# ------------------------------- wrapper ----------------------------------- #

def _vmem_limit_bytes():
    """Generation-aware VMEM budget (64 MiB physical on v7x, 128 MiB v5e/v6e)."""
    try:
        cap = pltpu.get_tpu_info().vmem_capacity_bytes
        return int(max(32 << 20, min(cap - (12 << 20), 100 << 20)))
    except Exception:
        return None   # compiler default (e.g. interpret mode)


def attention_pallas(x, params, *, num_heads, rope_base=10000.0, is_causal=False,
                     compute_dtype=jnp.bfloat16, q_tile=None):
    """x: (B, S, E) float32.  params: PyTorch-convention Linear weights/biases."""
    B, S, E = x.shape
    H = num_heads
    D = E // H
    assert D * H == E, "embed_dim must be divisible by num_heads"
    assert D % 2 == 0, "head_dim must be even"
    scale = D ** -0.5
    mxu_dtype = jnp.dtype(compute_dtype)

    if q_tile is None:
        q_tile = next((t for t in (512, 256, 128) if S % t == 0), S)
    assert S % q_tile == 0
    QT = S // q_tile

    # Fold the even/odd interleave of the reference RoPE into a per-head
    # permutation of the Q/K projection output dims ([evens | odds]); the
    # scores are invariant under a shared permutation of q and k.
    perm_within = np.concatenate([np.arange(0, D, 2), np.arange(1, D, 2)])
    perm = np.concatenate([h * D + perm_within for h in range(H)])

    def per_head_in(W, b, permute, out_scale=1.0):
        W = np.asarray(W, np.float32) * out_scale
        b = np.asarray(b, np.float32) * out_scale
        if permute:
            W = W[perm, :]
            b = b[perm]
        Wh = W.T.reshape(E, H, D).transpose(1, 0, 2)        # (H, E, D)
        bh = b.reshape(H, 1, D)                             # (H, 1, D)
        return jnp.asarray(Wh, mxu_dtype), jnp.asarray(bh, jnp.float32)

    # 1/sqrt(D) folded into the Q projection (RoPE is linear in q).
    wq, bq = per_head_in(params["wq"], params["bq"], True, out_scale=scale)
    wk, bk = per_head_in(params["wk"], params["bk"], True)
    wv, bv = per_head_in(params["wv"], params["bv"], False)
    wo_t = jnp.asarray(np.asarray(params["wo"], np.float32).T, mxu_dtype)  # (E, E)
    bo = jnp.asarray(np.asarray(params["bo"], np.float32).reshape(1, E), jnp.float32)

    # RoPE tables in rotate-half form; angles computed in float64 (review),
    # sign folded into the sin table ([-sin | sin]).
    inv_freq = rope_base ** (-np.arange(0, D, 2, dtype=np.float64) / D)
    ang = np.arange(S, dtype=np.float64)[:, None] * inv_freq[None, :]      # (S, D/2)
    cos_t = jnp.asarray(np.concatenate([np.cos(ang), np.cos(ang)], -1), jnp.float32)
    sin_t = jnp.asarray(np.concatenate([-np.sin(ang), np.sin(ang)], -1), jnp.float32)

    x_in = x.astype(mxu_dtype)        # bf16 storage halves DMA bytes
    vmem_limit = _vmem_limit_bytes()

    head_spec = lambda shape: pl.BlockSpec(shape, lambda b, h, qi: (h, 0, 0))

    core = functools.partial(_attn_core_kernel, q_tile=q_tile, head_dim=D,
                             is_causal=is_causal, mxu_dtype=mxu_dtype)

    # ---- kernel 1: fused QKV projections + RoPE + softmax attention --------
    ctx = pl.pallas_call(
        core,
        out_shape=jax.ShapeDtypeStruct((B, S, E), mxu_dtype),
        grid_spec=pltpu.PrefetchScalarGridSpec(
            num_scalar_prefetch=0,
            grid=(B, H, QT),
            in_specs=[
                pl.BlockSpec((1, S, E), lambda b, h, qi: (b, 0, 0),
                             pipeline_mode=pl.Buffered(1)),           # x (full seq)
                head_spec((1, E, D)),                                  # wq (scaled)
                head_spec((1, 1, D)),                                  # bq (scaled)
                head_spec((1, E, D)),                                  # wk
                head_spec((1, 1, D)),                                  # bk
                head_spec((1, E, D)),                                  # wv
                head_spec((1, 1, D)),                                  # bv
                pl.BlockSpec((S, D), lambda b, h, qi: (0, 0),
                             pipeline_mode=pl.Buffered(1)),            # cos
                pl.BlockSpec((S, D), lambda b, h, qi: (0, 0),
                             pipeline_mode=pl.Buffered(1)),            # sin (signed)
            ],
            out_specs=pl.BlockSpec((1, q_tile, D), lambda b, h, qi: (b, qi, h)),
            scratch_shapes=[pltpu.VMEM((S, D), mxu_dtype),             # K (RoPE'd)
                            pltpu.VMEM((S, D), mxu_dtype)],            # V
        ),
        compiler_params=pltpu.CompilerParams(
            dimension_semantics=("parallel", "parallel", "arbitrary"),
            vmem_limit_bytes=vmem_limit,
        ),
    )(x_in, wq, bq, wk, bk, wv, bv, cos_t, sin_t)

    # ---- kernel 2: output projection as one lane-dense GEMM ----------------
    out = pl.pallas_call(
        functools.partial(_out_proj_kernel, mxu_dtype=mxu_dtype),
        out_shape=jax.ShapeDtypeStruct((B, S, E), x.dtype),
        grid_spec=pltpu.PrefetchScalarGridSpec(
            num_scalar_prefetch=0,
            grid=(B, QT),
            in_specs=[
                pl.BlockSpec((1, q_tile, E), lambda b, i: (b, i, 0)),  # ctx concat
                pl.BlockSpec((E, E), lambda b, i: (0, 0),
                             pipeline_mode=pl.Buffered(1)),            # Wo^T
                pl.BlockSpec((1, E), lambda b, i: (0, 0),
                             pipeline_mode=pl.Buffered(1)),            # bo
            ],
            out_specs=pl.BlockSpec((1, q_tile, E), lambda b, i: (b, i, 0)),
        ),
        compiler_params=pltpu.CompilerParams(
            dimension_semantics=("parallel", "parallel"),
            vmem_limit_bytes=vmem_limit,
        ),
    )(ctx, wo_t, bo)
    return out


# --------------------------- pure-JAX reference ----------------------------- #

def _rope_interleaved_ref(t, rope_base):
    # t: (B, H, S, D) — matches the PyTorch RotaryEmbedding (offset=0).
    D = t.shape[-1]
    S = t.shape[-2]
    inv_freq = rope_base ** (-np.arange(0, D, 2, dtype=np.float32) / D)
    pos = np.arange(S, dtype=np.float32)
    ang = jnp.asarray(np.einsum("i,j->ij", pos, inv_freq))     # (S, D//2)
    sin, cos = jnp.sin(ang), jnp.cos(ang)
    te, to = t[..., 0::2], t[..., 1::2]
    re = te * cos - to * sin
    ro = te * sin + to * cos
    return jnp.stack([re, ro], axis=-1).reshape(t.shape)


def attention_reference(x, params, *, num_heads, rope_base=10000.0, is_causal=False):
    B, S, E = x.shape
    D = E // num_heads
    hp = jax.lax.Precision.HIGHEST
    q = jnp.dot(x, params["wq"].T, precision=hp) + params["bq"]
    k = jnp.dot(x, params["wk"].T, precision=hp) + params["bk"]
    v = jnp.dot(x, params["wv"].T, precision=hp) + params["bv"]
    q = q.reshape(B, S, num_heads, D).transpose(0, 2, 1, 3)
    k = k.reshape(B, S, num_heads, D).transpose(0, 2, 1, 3)
    v = v.reshape(B, S, num_heads, D).transpose(0, 2, 1, 3)
    q = _rope_interleaved_ref(q, rope_base)
    k = _rope_interleaved_ref(k, rope_base)
    attn = jnp.einsum("bhqd,bhkd->bhqk", q, k, precision=hp) * (D ** -0.5)
    if is_causal:
        mask = np.triu(np.ones((S, S), dtype=bool), k=1)
        attn = jnp.where(jnp.asarray(mask), -jnp.inf, attn)
    w = jax.nn.softmax(attn, axis=-1)
    out = jnp.einsum("bhqk,bhkd->bhqd", w, v, precision=hp)
    out = out.transpose(0, 2, 1, 3).reshape(B, S, E)
    return jnp.dot(out, params["wo"].T, precision=hp) + params["bo"]


# ---------------------------------- main ------------------------------------ #

if __name__ == "__main__":
    # Lane-aligned small shapes: E, D, S multiples of 128.
    B, S, E, H = 2, 256, 256, 2      # head_dim D = 128
    rope_base = 10000.0

    key = jax.random.PRNGKey(0)
    ks = jax.random.split(key, 9)

    def linear_init(kw, kb, fan_in, fan_out):
        bound = 1.0 / np.sqrt(fan_in)
        W = jax.random.uniform(kw, (fan_out, fan_in), jnp.float32, -bound, bound)
        b = jax.random.uniform(kb, (fan_out,), jnp.float32, -bound, bound)
        return np.asarray(W), np.asarray(b)

    wq, bq = linear_init(ks[0], ks[1], E, E)
    wk, bk = linear_init(ks[2], ks[3], E, E)
    wv, bv = linear_init(ks[4], ks[5], E, E)
    wo, bo = linear_init(ks[6], ks[7], E, E)
    params = dict(wq=wq, bq=bq, wk=wk, bk=bk, wv=wv, bv=bv, wo=wo, bo=bo)

    x = jax.random.normal(ks[8], (B, S, E), jnp.float32)

    # f32 compute path, non-causal (exercises q tiling + per-head K/V caching).
    out_f32 = attention_pallas(x, params, num_heads=H, rope_base=rope_base,
                               is_causal=False, compute_dtype=jnp.float32,
                               q_tile=128)
    out_f32 = jax.block_until_ready(out_f32)
    ref = attention_reference(x, params, num_heads=H, rope_base=rope_base,
                              is_causal=False)
    np.testing.assert_allclose(np.asarray(out_f32), np.asarray(ref),
                               rtol=1e-2, atol=1e-2)

    # bf16 storage / MXU path (f32 accumulation) + causal masking.
    out_bf16 = attention_pallas(x, params, num_heads=H, rope_base=rope_base,
                                is_causal=True, compute_dtype=jnp.bfloat16,
                                q_tile=128)
    out_bf16 = jax.block_until_ready(out_bf16)
    ref_c = attention_reference(x, params, num_heads=H, rope_base=rope_base,
                                is_causal=True)
    np.testing.assert_allclose(np.asarray(out_bf16), np.asarray(ref_c),
                               rtol=3e-2, atol=3e-2)

    print("KERNEL_OK")
</pallas_src>

<mosaic_0001>
module attributes {stable_mosaic.version = 11 : i64} {
  func.func @_attn_core_kernel(%arg0: i32, %arg1: i32, %arg2: i32, %arg3: memref<1x256x256xf32, #tpu.memory_space<vmem>>, %arg4: memref<1x256x128xf32, #tpu.memory_space<vmem>>, %arg5: memref<1x1x128xf32, #tpu.memory_space<vmem>>, %arg6: memref<1x256x128xf32, #tpu.memory_space<vmem>>, %arg7: memref<1x1x128xf32, #tpu.memory_space<vmem>>, %arg8: memref<1x256x128xf32, #tpu.memory_space<vmem>>, %arg9: memref<1x1x128xf32, #tpu.memory_space<vmem>>, %arg10: memref<256x128xf32, #tpu.memory_space<vmem>>, %arg11: memref<256x128xf32, #tpu.memory_space<vmem>>, %arg12: memref<1x128x128xf32, #tpu.memory_space<vmem>>, %arg13: memref<256x128xf32, #tpu.memory_space<vmem>>, %arg14: memref<256x128xf32, #tpu.memory_space<vmem>>) attributes {dimension_semantics = [#tpu.dimension_semantics<parallel>, #tpu.dimension_semantics<parallel>, #tpu.dimension_semantics<arbitrary>], iteration_bounds = array<i64: 2, 2, 2>, scalar_prefetch = 0 : i64, scratch_operands = 2 : i64, tpu.core_type = #tpu.core_type<tc>, window_params = [{pipeline_mode = #tpu.pipeline_mode<synchronous>, transform_indices = @transform_0, window_bounds = array<i64: 1, 256, 256>}, {transform_indices = @transform_1, window_bounds = array<i64: 1, 256, 128>}, {transform_indices = @transform_2, window_bounds = array<i64: 1, 1, 128>}, {transform_indices = @transform_3, window_bounds = array<i64: 1, 256, 128>}, {transform_indices = @transform_4, window_bounds = array<i64: 1, 1, 128>}, {transform_indices = @transform_5, window_bounds = array<i64: 1, 256, 128>}, {transform_indices = @transform_6, window_bounds = array<i64: 1, 1, 128>}, {pipeline_mode = #tpu.pipeline_mode<synchronous>, transform_indices = @transform_7, window_bounds = array<i64: 256, 128>}, {pipeline_mode = #tpu.pipeline_mode<synchronous>, transform_indices = @transform_8, window_bounds = array<i64: 256, 128>}, {transform_indices = @transform_9, window_bounds = array<i64: 1, 128, 128>}]} {
    %c0_i32 = arith.constant 0 : i32
    %0 = arith.cmpi eq, %arg2, %c0_i32 : i32
    %1 = arith.extui %0 : i1 to i32
    %c0_i32_0 = arith.constant 0 : i32
    %2 = arith.cmpi ne, %1, %c0_i32_0 : i32
    scf.if %2 {
      %c0_21 = arith.constant 0 : index
      %c0_22 = arith.constant 0 : index
      %c0_23 = arith.constant 0 : index
      %40 = vector.load %arg3[%c0_21, %c0_22, %c0_23] : memref<1x256x256xf32, #tpu.memory_space<vmem>>, vector<1x256x256xf32>
      %41 = vector.shape_cast %40 : vector<1x256x256xf32> to vector<256x256xf32>
      %c0_24 = arith.constant 0 : index
      %c0_25 = arith.constant 0 : index
      %c0_26 = arith.constant 0 : index
      %42 = vector.load %arg6[%c0_24, %c0_25, %c0_26] : memref<1x256x128xf32, #tpu.memory_space<vmem>>, vector<1x256x128xf32>
      %43 = vector.shape_cast %42 : vector<1x256x128xf32> to vector<256x128xf32>
      %cst_27 = arith.constant dense<0.000000e+00> : vector<256x128xf32>
      %44 = tpu.matmul %41, %43, %cst_27 {dimension_numbers = #tpu.dot_dimension_numbers<[1], [0], [0], [1], [0, 0, 1, 1], [], []>} : vector<256x256xf32>, vector<256x128xf32>, vector<256x128xf32> -> vector<256x128xf32>
      %c0_28 = arith.constant 0 : index
      %c0_29 = arith.constant 0 : index
      %c0_30 = arith.constant 0 : index
      %45 = vector.load %arg7[%c0_28, %c0_29, %c0_30] : memref<1x1x128xf32, #tpu.memory_space<vmem>>, vector<1x1x128xf32>
      %46 = vector.shape_cast %45 : vector<1x1x128xf32> to vector<1x128xf32>
      %47 = vector.broadcast %46 : vector<1x128xf32> to vector<256x128xf32>
      %48 = arith.addf %44, %47 : vector<256x128xf32>
      %c0_31 = arith.constant 0 : index
      %c0_32 = arith.constant 0 : index
      %c0_33 = arith.constant 0 : index
      %49 = vector.load %arg8[%c0_31, %c0_32, %c0_33] : memref<1x256x128xf32, #tpu.memory_space<vmem>>, vector<1x256x128xf32>
      %50 = vector.shape_cast %49 : vector<1x256x128xf32> to vector<256x128xf32>
      %cst_34 = arith.constant dense<0.000000e+00> : vector<256x128xf32>
      %51 = tpu.matmul %41, %50, %cst_34 {dimension_numbers = #tpu.dot_dimension_numbers<[1], [0], [0], [1], [0, 0, 1, 1], [], []>} : vector<256x256xf32>, vector<256x128xf32>, vector<256x128xf32> -> vector<256x128xf32>
      %c0_35 = arith.constant 0 : index
      %c0_36 = arith.constant 0 : index
      %c0_37 = arith.constant 0 : index
      %52 = vector.load %arg9[%c0_35, %c0_36, %c0_37] : memref<1x1x128xf32, #tpu.memory_space<vmem>>, vector<1x1x128xf32>
      %53 = vector.shape_cast %52 : vector<1x1x128xf32> to vector<1x128xf32>
      %54 = vector.broadcast %53 : vector<1x128xf32> to vector<256x128xf32>
      %55 = arith.addf %51, %54 : vector<256x128xf32>
      %c0_38 = arith.constant 0 : index
      %c0_39 = arith.constant 0 : index
      %56 = vector.load %arg10[%c0_38, %c0_39] : memref<256x128xf32, #tpu.memory_space<vmem>>, vector<256x128xf32>
      %c0_40 = arith.constant 0 : index
      %c0_41 = arith.constant 0 : index
      %57 = vector.load %arg11[%c0_40, %c0_41] : memref<256x128xf32, #tpu.memory_space<vmem>>, vector<256x128xf32>
      %58 = arith.mulf %48, %56 : vector<256x128xf32>
      %59 = vector.extract_strided_slice %48 {offsets = [0, 64], sizes = [256, 64], strides = [1, 1]} : vector<256x128xf32> to vector<256x64xf32>
      %60 = vector.extract_strided_slice %48 {offsets = [0, 0], sizes = [256, 64], strides = [1, 1]} : vector<256x128xf32> to vector<256x64xf32>
      %61 = tpu.concatenate %59, %60 in 1 : vector<256x64xf32>, vector<256x64xf32> -> vector<256x128xf32>
      %62 = arith.mulf %61, %57 : vector<256x128xf32>
      %63 = arith.addf %58, %62 : vector<256x128xf32>
      %c0_42 = arith.constant 0 : index
      %c0_43 = arith.constant 0 : index
      %64 = vector.load %arg13[%c0_42, %c0_43] : memref<256x128xf32, #tpu.memory_space<vmem>>, vector<256x128xf32>
      tpu.vector_store %arg13[%c0_42, %c0_43], %63 {strides = array<i32>} : memref<256x128xf32, #tpu.memory_space<vmem>>, vector<256x128xf32>,
      %c0_44 = arith.constant 0 : index
      %c0_45 = arith.constant 0 : index
      %65 = vector.load %arg14[%c0_44, %c0_45] : memref<256x128xf32, #tpu.memory_space<vmem>>, vector<256x128xf32>
      tpu.vector_store %arg14[%c0_44, %c0_45], %55 {strides = array<i32>} : memref<256x128xf32, #tpu.memory_space<vmem>>, vector<256x128xf32>,
    } else {
    }
    %c128_i32 = arith.constant 128 : i32
    %3 = arith.muli %arg2, %c128_i32 : i32
    %c0 = arith.constant 0 : index
    %4 = arith.index_cast %3 : i32 to index
    %c0_1 = arith.constant 0 : index
    %5 = vector.load %arg3[%c0, %4, %c0_1] : memref<1x256x256xf32, #tpu.memory_space<vmem>>, vector<1x128x256xf32>
    %6 = vector.shape_cast %5 : vector<1x128x256xf32> to vector<128x256xf32>
    %c0_2 = arith.constant 0 : index
    %c0_3 = arith.constant 0 : index
    %c0_4 = arith.constant 0 : index
    %7 = vector.load %arg4[%c0_2, %c0_3, %c0_4] : memref<1x256x128xf32, #tpu.memory_space<vmem>>, vector<1x256x128xf32>
    %8 = vector.shape_cast %7 : vector<1x256x128xf32> to vector<256x128xf32>
    %cst = arith.constant dense<0.000000e+00> : vector<128x128xf32>
    %9 = tpu.matmul %6, %8, %cst {dimension_numbers = #tpu.dot_dimension_numbers<[1], [0], [0], [1], [0, 0, 1, 1], [], []>} : vector<128x256xf32>, vector<256x128xf32>, vector<128x128xf32> -> vector<128x128xf32>
    %c0_5 = arith.constant 0 : index
    %c0_6 = arith.constant 0 : index
    %c0_7 = arith.constant 0 : index
    %10 = vector.load %arg5[%c0_5, %c0_6, %c0_7] : memref<1x1x128xf32, #tpu.memory_space<vmem>>, vector<1x1x128xf32>
    %11 = vector.shape_cast %10 : vector<1x1x128xf32> to vector<1x128xf32>
    %12 = vector.broadcast %11 : vector<1x128xf32> to vector<128x128xf32>
    %13 = arith.addf %9, %12 : vector<128x128xf32>
    %14 = arith.index_cast %3 : i32 to index
    %c0_8 = arith.constant 0 : index
    %15 = vector.load %arg10[%14, %c0_8] : memref<256x128xf32, #tpu.memory_space<vmem>>, vector<128x128xf32>
    %16 = arith.index_cast %3 : i32 to index
    %c0_9 = arith.constant 0 : index
    %17 = vector.load %arg11[%16, %c0_9] : memref<256x128xf32, #tpu.memory_space<vmem>>, vector<128x128xf32>
    %18 = arith.mulf %13, %15 : vector<128x128xf32>
    %19 = vector.extract_strided_slice %13 {offsets = [0, 64], sizes = [128, 64], strides = [1, 1]} : vector<128x128xf32> to vector<128x64xf32>
    %20 = vector.extract_strided_slice %13 {offsets = [0, 0], sizes = [128, 64], strides = [1, 1]} : vector<128x128xf32> to vector<128x64xf32>
    %21 = tpu.concatenate %19, %20 in 1 : vector<128x64xf32>, vector<128x64xf32> -> vector<128x128xf32>
    %22 = arith.mulf %21, %17 : vector<128x128xf32>
    %23 = arith.addf %18, %22 : vector<128x128xf32>
    %c0_10 = arith.constant 0 : index
    %c0_11 = arith.constant 0 : index
    %24 = vector.load %arg13[%c0_10, %c0_11] : memref<256x128xf32, #tpu.memory_space<vmem>>, vector<256x128xf32>
    %cst_12 = arith.constant dense<0.000000e+00> : vector<128x256xf32>
    %25 = tpu.matmul %23, %24, %cst_12 {dimension_numbers = #tpu.dot_dimension_numbers<[1], [1], [0], [0], [0, 0, 1, 0], [], []>} : vector<128x128xf32>, vector<256x128xf32>, vector<128x256xf32> -> vector<128x256xf32>
    %cst_13 = arith.constant dense<0xFF800000> : vector<128xf32>
    %26 = vector.multi_reduction <maximumf>, %25, %cst_13 [1] : vector<128x256xf32> to vector<128xf32>
    %27 = vector.shape_cast %26 : vector<128xf32> to vector<128x1xf32>
    %28 = vector.broadcast %27 : vector<128x1xf32> to vector<128x256xf32>
    %29 = arith.subf %25, %28 : vector<128x256xf32>
    %30 = math.exp %29 : vector<128x256xf32>
    %cst_14 = arith.constant dense<0.000000e+00> : vector<128xf32>
    %31 = vector.multi_reduction <add>, %30, %cst_14 [1] : vector<128x256xf32> to vector<128xf32>
    %32 = vector.shape_cast %31 : vector<128xf32> to vector<128x1xf32>
    %33 = vector.broadcast %32 : vector<128x1xf32> to vector<128x256xf32>
    %34 = arith.divf %30, %33 : vector<128x256xf32>
    %c0_15 = arith.constant 0 : index
    %c0_16 = arith.constant 0 : index
    %35 = vector.load %arg14[%c0_15, %c0_16] : memref<256x128xf32, #tpu.memory_space<vmem>>, vector<256x128xf32>
    %cst_17 = arith.constant dense<0.000000e+00> : vector<128x128xf32>
    %36 = tpu.matmul %34, %35, %cst_17 {dimension_numbers = #tpu.dot_dimension_numbers<[1], [0], [0], [1], [0, 0, 1, 1], [], []>} : vector<128x256xf32>, vector<256x128xf32>, vector<128x128xf32> -> vector<128x128xf32>
    %c0_18 = arith.constant 0 : index
    %c0_19 = arith.constant 0 : index
    %c0_20 = arith.constant 0 : index
    %37 = vector.load %arg12[%c0_18, %c0_19, %c0_20] : memref<1x128x128xf32, #tpu.memory_space<vmem>>, vector<1x128x128xf32>
    %38 = vector.shape_cast %37 : vector<1x128x128xf32> to vector<128x128xf32>
    %39 = vector.shape_cast %36 : vector<128x128xf32> to vector<1x128x128xf32>
    tpu.vector_store %arg12[%c0_18, %c0_19, %c0_20], %39 {strides = array<i32>} : memref<1x128x128xf32, #tpu.memory_space<vmem>>, vector<1x128x128xf32>,
    return
  }
  func.func @transform_0(%arg0: i32, %arg1: i32, %arg2: i32) -> (i32, i32, i32) {
    %c0_i32 = arith.constant 0 : i32
    %c0_i32_0 = arith.constant 0 : i32
    %c0_i32_1 = arith.constant 0 : i32
    return %arg0, %c0_i32, %c0_i32_0 : i32, i32, i32
  }
  func.func @transform_1(%arg0: i32, %arg1: i32, %arg2: i32) -> (i32, i32, i32) {
    %c0_i32 = arith.constant 0 : i32
    %c0_i32_0 = arith.constant 0 : i32
    %c0_i32_1 = arith.constant 0 : i32
    return %arg1, %c0_i32, %c0_i32_0 : i32, i32, i32
  }
  func.func @transform_2(%arg0: i32, %arg1: i32, %arg2: i32) -> (i32, i32, i32) {
    %c0_i32 = arith.constant 0 : i32
    %c0_i32_0 = arith.constant 0 : i32
    %c0_i32_1 = arith.constant 0 : i32
    return %arg1, %c0_i32, %c0_i32_0 : i32, i32, i32
  }
  func.func @transform_3(%arg0: i32, %arg1: i32, %arg2: i32) -> (i32, i32, i32) {
    %c0_i32 = arith.constant 0 : i32
    %c0_i32_0 = arith.constant 0 : i32
    %c0_i32_1 = arith.constant 0 : i32
    return %arg1, %c0_i32, %c0_i32_0 : i32, i32, i32
  }
  func.func @transform_4(%arg0: i32, %arg1: i32, %arg2: i32) -> (i32, i32, i32) {
    %c0_i32 = arith.constant 0 : i32
    %c0_i32_0 = arith.constant 0 : i32
    %c0_i32_1 = arith.constant 0 : i32
    return %arg1, %c0_i32, %c0_i32_0 : i32, i32, i32
  }
  func.func @transform_5(%arg0: i32, %arg1: i32, %arg2: i32) -> (i32, i32, i32) {
    %c0_i32 = arith.constant 0 : i32
    %c0_i32_0 = arith.constant 0 : i32
    %c0_i32_1 = arith.constant 0 : i32
    return %arg1, %c0_i32, %c0_i32_0 : i32, i32, i32
  }
  func.func @transform_6(%arg0: i32, %arg1: i32, %arg2: i32) -> (i32, i32, i32) {
    %c0_i32 = arith.constant 0 : i32
    %c0_i32_0 = arith.constant 0 : i32
    %c0_i32_1 = arith.constant 0 : i32
    return %arg1, %c0_i32, %c0_i32_0 : i32, i32, i32
  }
  func.func @transform_7(%arg0: i32, %arg1: i32, %arg2: i32) -> (i32, i32) {
    %c0_i32 = arith.constant 0 : i32
    %c0_i32_0 = arith.constant 0 : i32
    %c0_i32_1 = arith.constant 0 : i32
    return %c0_i32, %c0_i32_0 : i32, i32
  }
  func.func @transform_8(%arg0: i32, %arg1: i32, %arg2: i32) -> (i32, i32) {
    %c0_i32 = arith.constant 0 : i32
    %c0_i32_0 = arith.constant 0 : i32
    %c0_i32_1 = arith.constant 0 : i32
    return %c0_i32, %c0_i32_0 : i32, i32
  }
  func.func @transform_9(%arg0: i32, %arg1: i32, %arg2: i32) -> (i32, i32, i32) {
    %c0_i32 = arith.constant 0 : i32
    return %arg0, %arg2, %arg1 : i32, i32, i32
  }
}

</mosaic_0001>

<llo_original>
// kernel: tpu_custom_call.1
$region0: #{tpu_custom_call.1}
  #allocation0 [shape = 'u32[]', space=smem, size = 0x4, offset = 0x4, fixed_abs, tag = 'smem constant byte address 0x4 - core index']
  #allocation1 [shape = 'u32[144,128]{1,0:T(1,128)}', space=vmem, size = 0x12000, scoped, tag = 'internal scratch']
  #allocation2 [shape = 'f32[256,128]{1,0:T(8,128)}', space=vmem, size = 0x20000, scoped, tag = 'scratch operand']
  #allocation3 [shape = 'f32[256,128]{1,0:T(8,128)}', space=vmem, size = 0x20000, scoped, tag = 'scratch operand']
  %s0 = inlined_call_operand.hbm [shape: f32[2,256,256], index: 0, kind: input, shape index: {}]
  %s1 = inlined_call_operand.hbm [shape: f32[2,256,128], index: 1, kind: input, shape index: {}]
  %s2 = inlined_call_operand.vmem [shape: f32[2,1,128], index: 2, kind: input, shape index: {}]
  %s3 = inlined_call_operand.hbm [shape: f32[2,256,128], index: 3, kind: input, shape index: {}]
  %s4 = inlined_call_operand.vmem [shape: f32[2,1,128], index: 4, kind: input, shape index: {}]
  %s5 = inlined_call_operand.hbm [shape: f32[2,256,128], index: 5, kind: input, shape index: {}]
  %s6 = inlined_call_operand.vmem [shape: f32[2,1,128], index: 6, kind: input, shape index: {}]
  %s7 = inlined_call_operand.hbm [shape: f32[256,128], index: 7, kind: input, shape index: {}]
  %s8 = inlined_call_operand.hbm [shape: f32[256,128], index: 8, kind: input, shape index: {}]
  %s9 = inlined_call_operand.hbm [shape: f32[2,256,256], index: 9, kind: output, shape index: {}]
  %s10 = sld [smem:[#allocation0]]
  $region97: #{tpu_custom_call.1} parent=0
    _
  %s12 = ssub.s32 1, %s10
  %s13 = scalar_select 0, %s12, %s10
  $region1: #{tpu_custom_call.1} parent=0
    #allocation4 [shape = 'u8[262144]{0}', space=vmem, size = 0x40000, scoped, tag = 'input window, operand 0, single buffered']
    #allocation5 [shape = 's32[2]{0}', space=sflag, size = 0x8, scoped, tag = 'scoped memory for tpu_custom_call.1']
    #allocation6 [shape = 's32[2]{0}', space=sflag, size = 0x8, scoped, tag = 'scoped memory for tpu_custom_call.1']
    #allocation7 [shape = 'u8[262144]{0}', space=vmem, size = 0x40000, scoped, tag = 'input window, operand 1']
    #allocation8 [shape = 's32[2]{0}', space=sflag, size = 0x8, scoped, tag = 'scoped memory for tpu_custom_call.1']
    #allocation9 [shape = 'u8[262144]{0}', space=vmem, size = 0x40000, scoped, tag = 'input window, operand 3']
    #allocation10 [shape = 'u8[262144]{0}', space=vmem, size = 0x40000, scoped, tag = 'input window, operand 5']
    #allocation11 [shape = 's32[2]{0}', space=sflag, size = 0x8, scoped, tag = 'scoped memory for tpu_custom_call.1']
    #allocation12 [shape = 'u8[131072]{0}', space=vmem, size = 0x20000, scoped, tag = 'input window, operand 7, single buffered']
    #allocation13 [shape = 'u8[131072]{0}', space=vmem, size = 0x20000, scoped, tag = 'input window, operand 8, single buffered']
    #allocation14 [shape = 's32[1]{0}', space=sflag, size = 0x4, scoped, tag = 'scoped memory for tpu_custom_call.1']
    #allocation15 [shape = 'u8[131072]{0}', space=vmem, size = 0x20000, scoped, tag = 'output window, operand 0']
    %14 = vsyncpa [#allocation5], 0
    %15 = vsyncpa [#allocation8], 0
    %s16 = scalar_lea.sflag [#allocation8], 1
    %17 = vsyncpa %s16, 0
    %18 = vsyncpa [#allocation11], 0
    %s19 = scalar_lea.sflag [#allocation11], 1
    %20 = vsyncpa %s19, 0
    %21 = vsyncpa [#allocation14], 0
    %22 = vsyncpa [#allocation6], 0
    %s23 = scalar_lea.sflag [#allocation6], 1
    %24 = vsyncpa %s23, 0
    loop: start=0, step=1, limit=10
    $region2: #{tpu_custom_call.1} parent=1 // loop_pre_header
      _
    $region3: #{tpu_custom_call.1} parent=1 // loop_header
      %s26 = sphi 0, %s30
      %p27 = scmp.ge.s32.totalorder %s26, 10
      %s33 = sphi 0, %s52
      %s34 = sphi 0, %s48
      %s35 = sphi 0, %s44
      %s36 = sphi 0, %s33
      %s37 = sphi 0, %s34
      %s38 = sphi 0, %s35
      %s39 = sphi 0, %s36
      %s40 = sphi 0, %s37
      %s41 = sphi 0, %s38
      %s55 = sphi 0, %s57
      %s58 = sphi 0, %s55
      %s59 = sphi 0, %s58
      %s75 = sphi 0, %s59
      %s81 = sphi 0, %s83
      %s84 = sphi 0, %s81
      %s85 = sphi 0, %s84
      %s101 = sphi 0, %s85
      %s107 = sphi 0, %s109
      %s110 = sphi 0, %s107
      %s111 = sphi 0, %s110
      %s127 = sphi 0, %s111
      %s133 = sphi 0, %s135
      %s136 = sphi 0, %s133
      %s137 = sphi 0, %s136
      %s153 = sphi 0, %s137
      %s159 = sphi 0, %s161
      %s162 = sphi 0, %s159
      %s163 = sphi 0, %s162
      %s179 = sphi 0, %s163
      %s185 = sphi 0, %s187
      %s188 = sphi 0, %s185
      %s189 = sphi 0, %s188
      %s205 = sphi 0, %s189
      %s211 = sphi 0, %s213
      %s214 = sphi 0, %s211
      %s215 = sphi 0, %s214
      %s231 = sphi 0, %s215
      %s235 = sphi 0, %s235
      %s237 = sphi 0, %s235
      %s238 = sphi 0, %s237
      %s252 = sphi 0, %s238
      %s256 = sphi 0, %s256
      %s258 = sphi 0, %s256
      %s259 = sphi 0, %s258
      %s273 = sphi 0, %s259
      %s283 = sphi 0, %s285
      %s286 = sphi 0, %s283
      %s287 = sphi 0, %s286
      %s303 = sphi 0, %s287
    $region4: #{tpu_custom_call.1} parent=1 // loop_header_branch
      %29 = sbr.rel (%p27) target = $region8
    $region5: #{tpu_custom_call.1} parent=1 // loop_body
      %s31 = ssub.s32 %s26, 1
      %s32 = ssub.s32 %s26, 2
      %s42 = sadd.s32 1, %s35
      %p43 = scmp.ge.s32.totalorder %s42, 2
      %s44 = scalar_select %p43, 0, %s42
      %s45 = sadd.s32 1, %s34
      %s46 = scalar_select %p43, %s45, %s34
      %p47 = scmp.ge.s32.totalorder %s46, 2
      %s48 = scalar_select %p47, 0, %s46
      %s49 = sadd.s32 1, %s33
      %s50 = scalar_select %p47, %s49, %s33
      %p51 = scmp.ge.s32.totalorder %s50, 2
      %s52 = scalar_select %p51, 0, %s50
      %s53 = ssub.s32 %s33, %s52
      %p54 = scmp.eq.s32.totalorder %s53, 0
      %s56 = sadd.s32 %s55, 1
      %s57 = scalar_select %p54, %s55, %s56
      %p60 = pneg %p54
      %p61 = scmp.eq.s32.totalorder %s26, 7
      %p62 = por %p60, %p61
      %p63 = scmp.ne.s32.totalorder %s55, %s58
      %p64 = scmp.eq.s32.totalorder %s26, 0
      %p65 = por %p63, %p64
      %p66 = scmp.ne.s32.totalorder %s55, %s58
      %p67 = scmp.eq.s32.totalorder %s31, 7
      %p68 = por %p66, %p67
      %p69 = scmp.ne.s32.totalorder %s58, %s59
      %p70 = scmp.eq.s32.totalorder %s31, 0
      %p71 = por %p69, %p70
      %p72 = scmp.ne.s32.totalorder %s58, %s59
      %p73 = scmp.eq.s32.totalorder %s32, 7
      %p74 = por %p72, %p73
      %p76 = scmp.ne.s32.totalorder %s59, %s75
      %p77 = scmp.eq.s32.totalorder %s32, 0
      %p78 = por %p76, %p77
      %s79 = ssub.s32 %s34, %s48
      %p80 = scmp.eq.s32.totalorder %s79, 0
      %s82 = sadd.s32 %s81, 1
      %s83 = scalar_select %p80, %s81, %s82
      %p86 = pneg %p80
      %p87 = scmp.eq.s32.totalorder %s26, 7
      %p88 = por %p86, %p87
      %p89 = scmp.ne.s32.totalorder %s81, %s84
      %p90 = scmp.eq.s32.totalorder %s26, 0
      %p91 = por %p89, %p90
      %p92 = scmp.ne.s32.totalorder %s81, %s84
      %p93 = scmp.eq.s32.totalorder %s31, 7
      %p94 = por %p92, %p93
      %p95 = scmp.ne.s32.totalorder %s84, %s85
      %p96 = scmp.eq.s32.totalorder %s31, 0
      %p97 = por %p95, %p96
      %p98 = scmp.ne.s32.totalorder %s84, %s85
      %p99 = scmp.eq.s32.totalorder %s32, 7
      %p100 = por %p98, %p99
      %p102 = scmp.ne.s32.totalorder %s85, %s101
      %p103 = scmp.eq.s32.totalorder %s32, 0
      %p104 = por %p102, %p103
      %s105 = ssub.s32 %s34, %s48
      %p106 = scmp.eq.s32.totalorder %s105, 0
      %s108 = sadd.s32 %s107, 1
      %s109 = scalar_select %p106, %s107, %s108
      %p112 = pneg %p106
      %p113 = scmp.eq.s32.totalorder %s26, 7
      %p114 = por %p112, %p113
      %p115 = scmp.ne.s32.totalorder %s107, %s110
      %p116 = scmp.eq.s32.totalorder %s26, 0
      %p117 = por %p115, %p116
      %p118 = scmp.ne.s32.totalorder %s107, %s110
      %p119 = scmp.eq.s32.totalorder %s31, 7
      %p120 = por %p118, %p119
      %p121 = scmp.ne.s32.totalorder %s110, %s111
      %p122 = scmp.eq.s32.totalorder %s31, 0
      %p123 = por %p121, %p122
      %p124 = scmp.ne.s32.totalorder %s110, %s111
      %p125 = scmp.eq.s32.totalorder %s32, 7
      %p126 = por %p124, %p125
      %p128 = scmp.ne.s32.totalorder %s111, %s127
      %p129 = scmp.eq.s32.totalorder %s32, 0
      %p130 = por %p128, %p129
      %s131 = ssub.s32 %s34, %s48
      %p132 = scmp.eq.s32.totalorder %s131, 0
      %s134 = sadd.s32 %s133, 1
      %s135 = scalar_select %p132, %s133, %s134
      %p138 = pneg %p132
      %p139 = scmp.eq.s32.totalorder %s26, 7
      %p140 = por %p138, %p139
      %p141 = scmp.ne.s32.totalorder %s133, %s136
      %p142 = scmp.eq.s32.totalorder %s26, 0
      %p143 = por %p141, %p142
      %p144 = scmp.ne.s32.totalorder %s133, %s136
      %p145 = scmp.eq.s32.totalorder %s31, 7
      %p146 = por %p144, %p145
      %p147 = scmp.ne.s32.totalorder %s136, %s137
      %p148 = scmp.eq.s32.totalorder %s31, 0
      %p149 = por %p147, %p148
      %p150 = scmp.ne.s32.totalorder %s136, %s137
      %p151 = scmp.eq.s32.totalorder %s32, 7
      %p152 = por %p150, %p151
      %p154 = scmp.ne.s32.totalorder %s137, %s153
      %p155 = scmp.eq.s32.totalorder %s32, 0
      %p156 = por %p154, %p155
      %s157 = ssub.s32 %s34, %s48
      %p158 = scmp.eq.s32.totalorder %s157, 0
      %s160 = sadd.s32 %s159, 1
      %s161 = scalar_select %p158, %s159, %s160
      %p164 = pneg %p158
      %p165 = scmp.eq.s32.totalorder %s26, 7
      %p166 = por %p164, %p165
      %p167 = scmp.ne.s32.totalorder %s159, %s162
      %p168 = scmp.eq.s32.totalorder %s26, 0
      %p169 = por %p167, %p168
      %p170 = scmp.ne.s32.totalorder %s159, %s162
      %p171 = scmp.eq.s32.totalorder %s31, 7
      %p172 = por %p170, %p171
      %p173 = scmp.ne.s32.totalorder %s162, %s163
      %p174 = scmp.eq.s32.totalorder %s31, 0
      %p175 = por %p173, %p174
      %p176 = scmp.ne.s32.totalorder %s162, %s163
      %p177 = scmp.eq.s32.totalorder %s32, 7
      %p178 = por %p176, %p177
      %p180 = scmp.ne.s32.totalorder %s163, %s179
      %p181 = scmp.eq.s32.totalorder %s32, 0
      %p182 = por %p180, %p181
      %s183 = ssub.s32 %s34, %s48
      %p184 = scmp.eq.s32.totalorder %s183, 0
      %s186 = sadd.s32 %s185, 1
      %s187 = scalar_select %p184, %s185, %s186
      %p190 = pneg %p184
      %p191 = scmp.eq.s32.totalorder %s26, 7
      %p192 = por %p190, %p191
      %p193 = scmp.ne.s32.totalorder %s185, %s188
      %p194 = scmp.eq.s32.totalorder %s26, 0
      %p195 = por %p193, %p194
      %p196 = scmp.ne.s32.totalorder %s185, %s188
      %p197 = scmp.eq.s32.totalorder %s31, 7
      %p198 = por %p196, %p197
      %p199 = scmp.ne.s32.totalorder %s188, %s189
      %p200 = scmp.eq.s32.totalorder %s31, 0
      %p201 = por %p199, %p200
      %p202 = scmp.ne.s32.totalorder %s188, %s189
      %p203 = scmp.eq.s32.totalorder %s32, 7
      %p204 = por %p202, %p203
      %p206 = scmp.ne.s32.totalorder %s189, %s205
      %p207 = scmp.eq.s32.totalorder %s32, 0
      %p208 = por %p206, %p207
      %s209 = ssub.s32 %s34, %s48
      %p210 = scmp.eq.s32.totalorder %s209, 0
      %s212 = sadd.s32 %s211, 1
      %s213 = scalar_select %p210, %s211, %s212
      %p216 = pneg %p210
      %p217 = scmp.eq.s32.totalorder %s26, 7
      %p218 = por %p216, %p217
      %p219 = scmp.ne.s32.totalorder %s211, %s214
      %p220 = scmp.eq.s32.totalorder %s26, 0
      %p221 = por %p219, %p220
      %p222 = scmp.ne.s32.totalorder %s211, %s214
      %p223 = scmp.eq.s32.totalorder %s31, 7
      %p224 = por %p222, %p223
      %p225 = scmp.ne.s32.totalorder %s214, %s215
      %p226 = scmp.eq.s32.totalorder %s31, 0
      %p227 = por %p225, %p226
      %p228 = scmp.ne.s32.totalorder %s214, %s215
      %p229 = scmp.eq.s32.totalorder %s32, 7
      %p230 = por %p228, %p229
      %p232 = scmp.ne.s32.totalorder %s215, %s231
      %p233 = scmp.eq.s32.totalorder %s32, 0
      %p234 = por %p232, %p233
      %s236 = sadd.s32 %s235, 1
      %p239 = scmp.eq.s32.totalorder %s26, 7
      %p240 = scmp.ne.s32.totalorder %s235, %s237
      %p241 = scmp.eq.s32.totalorder %s26, 0
      %p242 = por %p240, %p241
      %p243 = scmp.ne.s32.totalorder %s235, %s237
      %p244 = scmp.eq.s32.totalorder %s31, 7
      %p245 = por %p243, %p244
      %p246 = scmp.ne.s32.totalorder %s237, %s238
      %p247 = scmp.eq.s32.totalorder %s31, 0
      %p248 = por %p246, %p247
      %p249 = scmp.ne.s32.totalorder %s237, %s238
      %p250 = scmp.eq.s32.totalorder %s32, 7
      %p251 = por %p249, %p250
      %p253 = scmp.ne.s32.totalorder %s238, %s252
      %p254 = scmp.eq.s32.totalorder %s32, 0
      %p255 = por %p253, %p254
      %s257 = sadd.s32 %s256, 1
      %p260 = scmp.eq.s32.totalorder %s26, 7
      %p261 = scmp.ne.s32.totalorder %s256, %s258
      %p262 = scmp.eq.s32.totalorder %s26, 0
      %p263 = por %p261, %p262
      %p264 = scmp.ne.s32.totalorder %s256, %s258
      %p265 = scmp.eq.s32.totalorder %s31, 7
      %p266 = por %p264, %p265
      %p267 = scmp.ne.s32.totalorder %s258, %s259
      %p268 = scmp.eq.s32.totalorder %s31, 0
      %p269 = por %p267, %p268
      %p270 = scmp.ne.s32.totalorder %s258, %s259
      %p271 = scmp.eq.s32.totalorder %s32, 7
      %p272 = por %p270, %p271
      %p274 = scmp.ne.s32.totalorder %s259, %s273
      %p275 = scmp.eq.s32.totalorder %s32, 0
      %p276 = por %p274, %p275
      %s277 = ssub.s32 %s33, %s52
      %s278 = ssub.s32 %s35, %s44
      %s279 = sor.u32 %s277, %s278
      %s280 = ssub.s32 %s34, %s48
      %s281 = sor.u32 %s279, %s280
      %p282 = scmp.eq.s32.totalorder %s281, 0
      %s284 = sadd.s32 %s283, 1
      %s285 = scalar_select %p282, %s283, %s284
      %p288 = pneg %p282
      %p289 = scmp.eq.s32.totalorder %s26, 7
      %p290 = por %p288, %p289
      %p291 = scmp.ne.s32.totalorder %s283, %s286
      %p292 = scmp.eq.s32.totalorder %s26, 0
      %p293 = por %p291, %p292
      %p294 = scmp.ne.s32.totalorder %s283, %s286
      %p295 = scmp.eq.s32.totalorder %s31, 7
      %p296 = por %p294, %p295
      %p297 = scmp.ne.s32.totalorder %s286, %s287
      %p298 = scmp.eq.s32.totalorder %s31, 0
      %p299 = por %p297, %p298
      %p300 = scmp.ne.s32.totalorder %s286, %s287
      %p301 = scmp.eq.s32.totalorder %s32, 7
      %p302 = por %p300, %p301
      %p304 = scmp.ne.s32.totalorder %s287, %s303
      %p305 = scmp.eq.s32.totalorder %s32, 0
      %p306 = por %p304, %p305
      %p307 = scmp.le.s32.totalorder 1, %s26
      %p308 = scmp.lt.s32.totalorder %s26, 9
      %p309 = pnand %p307, %p308
      %p310 = pneg %p309
      // Predicated region
      $region9: #{tpu_custom_call.1} parent=5 // pred_check
        _
      $region10: #{tpu_custom_call.1} parent=5 // pred_check_branch
        %312 = sbr.rel (%p309) target = $region12
      $region11: #{tpu_custom_call.1} parent=5 // pred_region
        %s313 = ssub.s32 %s26, 1
        // Predicated region
        $region13: #{tpu_custom_call.1} parent=11 // pred_check
          %p314 = pneg %p71
        $region14: #{tpu_custom_call.1} parent=11 // pred_check_branch
          %316 = sbr.rel (%p314) target = $region16
        $region15: #{tpu_custom_call.1} parent=11 // pred_region
          %s318 = ssub.s32 8192, 8192
          %319 = vsyncadd [#allocation5], %s318
          %s320 = smul.addr %s36, 64
          %s321 = smul.addr %s320, 128
          %s322 = scalar_lea.hbm %s0, %s321
          %s323 = sshll.u32 [#allocation4], 4
          %s324 = int_to_ptr.vmem [resolvable:$true] %s323
          %329 = dma.hbm_to_vmem [thread:$0]  %s322, 8192, %s324, [#allocation5], 256, 256, 16
        $region16: #{tpu_custom_call.1} parent=11 // pred_fallthru
          _
        // Predicated region
        $region17: #{tpu_custom_call.1} parent=11 // pred_check
          %p330 = pneg %p248
        $region18: #{tpu_custom_call.1} parent=11 // pred_check_branch
          %332 = sbr.rel (%p330) target = $region20
        $region19: #{tpu_custom_call.1} parent=11 // pred_region
          %s334 = ssub.s32 4096, 4096
          %335 = vsyncadd [#allocation11], %s334
          %s336 = sshll.u32 [#allocation12], 4
          %s337 = int_to_ptr.vmem [resolvable:$true] %s336
          %342 = dma.hbm_to_vmem [thread:$0]  %s7, 4096, %s337, [#allocation11], 128, 128, 8
        $region20: #{tpu_custom_call.1} parent=11 // pred_fallthru
          _
        // Predicated region
        $region21: #{tpu_custom_call.1} parent=11 // pred_check
          %p343 = pneg %p269
        $region22: #{tpu_custom_call.1} parent=11 // pred_check_branch
          %345 = sbr.rel (%p343) target = $region24
        $region23: #{tpu_custom_call.1} parent=11 // pred_region
          %s347 = ssub.s32 4096, 4096
          %348 = vsyncadd [#allocation14], %s347
          %s349 = sshll.u32 [#allocation13], 4
          %s350 = int_to_ptr.vmem [resolvable:$true] %s349
          %355 = dma.hbm_to_vmem [thread:$0]  %s8, 4096, %s350, [#allocation14], 128, 128, 8
        $region24: #{tpu_custom_call.1} parent=11 // pred_fallthru
          _
      $region12: #{tpu_custom_call.1} parent=5 // pred_fallthru
        _
      %p356 = scmp.lt.s32.totalorder %s26, 8
      // Predicated region
      $region25: #{tpu_custom_call.1} parent=5 // pred_check
        %p357 = pneg %p356
      $region26: #{tpu_custom_call.1} parent=5 // pred_check_branch
        %359 = sbr.rel (%p357) target = $region28
      $region27: #{tpu_custom_call.1} parent=5 // pred_region
        // Predicated region
        $region29: #{tpu_custom_call.1} parent=27 // pred_check
          %p360 = pneg %p91
        $region30: #{tpu_custom_call.1} parent=27 // pred_check_branch
          %362 = sbr.rel (%p360) target = $region32
        $region31: #{tpu_custom_call.1} parent=27 // pred_region
          %s363 = sand.u32 %s26, 1
          %s364 = scalar_lea.sflag [#allocation8], %s363
          %s365 = sand.u32 %s81, 1
          %s366 = smul.addr %s365, 256
          %s367 = scalar_lea.vmem [#allocation7], %s366
          %s369 = ssub.s32 4096, 4096
          %370 = vsyncadd %s364, %s369
          %s371 = smul.addr %s34, 32
          %s372 = smul.addr %s371, 128
          %s373 = scalar_lea.hbm %s1, %s372
          %s374 = sshll.u32 %s367, 4
          %s375 = int_to_ptr.vmem [resolvable:$true] %s374
          %380 = dma.hbm_to_vmem [thread:$0]  %s373, 4096, %s375, %s364, 128, 128, 8
        $region32: #{tpu_custom_call.1} parent=27 // pred_fallthru
          _
        // Predicated region
        $region33: #{tpu_custom_call.1} parent=27 // pred_check
          %p381 = pneg %p117
        $region34: #{tpu_custom_call.1} parent=27 // pred_check_branch
          %383 = sbr.rel (%p381) target = $region36
        $region35: #{tpu_custom_call.1} parent=27 // pred_region
          %p384 = scmp.lt.s32.totalorder %s34, 1
          %s385 = scalar_select %p384, %s34, 1
          %s386 = scalar_lea.vmem %s2, %s385
        $region36: #{tpu_custom_call.1} parent=27 // pred_fallthru
          _
        // Predicated region
        $region37: #{tpu_custom_call.1} parent=27 // pred_check
          %p387 = pneg %p143
        $region38: #{tpu_custom_call.1} parent=27 // pred_check_branch
          %389 = sbr.rel (%p387) target = $region40
        $region39: #{tpu_custom_call.1} parent=27 // pred_region
          %s390 = sand.u32 %s26, 1
          %s391 = scalar_lea.sflag [#allocation8], %s390
          %s392 = sand.u32 %s133, 1
          %s393 = smul.addr %s392, 256
          %s394 = scalar_lea.vmem [#allocation9], %s393
          %s396 = ssub.s32 4096, 4096
          %397 = vsyncadd %s391, %s396
          %s398 = smul.addr %s34, 32
          %s399 = smul.addr %s398, 128
          %s400 = scalar_lea.hbm %s3, %s399
          %s401 = sshll.u32 %s394, 4
          %s402 = int_to_ptr.vmem [resolvable:$true] %s401
          %407 = dma.hbm_to_vmem [thread:$0]  %s400, 4096, %s402, %s391, 128, 128, 8
        $region40: #{tpu_custom_call.1} parent=27 // pred_fallthru
          _
        // Predicated region
        $region41: #{tpu_custom_call.1} parent=27 // pred_check
          %p408 = pneg %p169
        $region42: #{tpu_custom_call.1} parent=27 // pred_check_branch
          %410 = sbr.rel (%p408) target = $region44
        $region43: #{tpu_custom_call.1} parent=27 // pred_region
          %p411 = scmp.lt.s32.totalorder %s34, 1
          %s412 = scalar_select %p411, %s34, 1
          %s413 = scalar_lea.vmem %s4, %s412
        $region44: #{tpu_custom_call.1} parent=27 // pred_fallthru
          _
        // Predicated region
        $region45: #{tpu_custom_call.1} parent=27 // pred_check
          %p414 = pneg %p195
        $region46: #{tpu_custom_call.1} parent=27 // pred_check_branch
          %416 = sbr.rel (%p414) target = $region48
        $region47: #{tpu_custom_call.1} parent=27 // pred_region
          %s417 = sand.u32 %s26, 1
          %s418 = scalar_lea.sflag [#allocation11], %s417
          %s419 = sand.u32 %s185, 1
          %s420 = smul.addr %s419, 256
          %s421 = scalar_lea.vmem [#allocation10], %s420
          %s423 = ssub.s32 4096, 4096
          %424 = vsyncadd %s418, %s423
          %s425 = smul.addr %s34, 32
          %s426 = smul.addr %s425, 128
          %s427 = scalar_lea.hbm %s5, %s426
          %s428 = sshll.u32 %s421, 4
          %s429 = int_to_ptr.vmem [resolvable:$true] %s428
          %434 = dma.hbm_to_vmem [thread:$0]  %s427, 4096, %s429, %s418, 128, 128, 8
        $region48: #{tpu_custom_call.1} parent=27 // pred_fallthru
          _
        // Predicated region
        $region49: #{tpu_custom_call.1} parent=27 // pred_check
          %p435 = pneg %p221
        $region50: #{tpu_custom_call.1} parent=27 // pred_check_branch
          %437 = sbr.rel (%p435) target = $region52
        $region51: #{tpu_custom_call.1} parent=27 // pred_region
          %p438 = scmp.lt.s32.totalorder %s34, 1
          %s439 = scalar_select %p438, %s34, 1
          %s440 = scalar_lea.vmem %s6, %s439
        $region52: #{tpu_custom_call.1} parent=27 // pred_fallthru
          _
      $region28: #{tpu_custom_call.1} parent=5 // pred_fallthru
        _
      %p441 = scmp.le.s32.totalorder 1, %s26
      %p442 = scmp.lt.s32.totalorder %s26, 9
      %p443 = pnand %p441, %p442
      %p444 = pneg %p443
      // Predicated region
      $region53: #{tpu_custom_call.1} parent=5 // pred_check
        _
      $region54: #{tpu_custom_call.1} parent=5 // pred_check_branch
        %446 = sbr.rel (%p443) target = $region56
      $region55: #{tpu_custom_call.1} parent=5 // pred_region
        %s447 = ssub.s32 %s26, 1
        // Predicated region
        $region57: #{tpu_custom_call.1} parent=55 // pred_check
          %p448 = pneg %p71
        $region58: #{tpu_custom_call.1} parent=55 // pred_check_branch
          %450 = sbr.rel (%p448) target = $region60
        $region59: #{tpu_custom_call.1} parent=55 // pred_region
          %451 = dma.done [#allocation5], 8192
        $region60: #{tpu_custom_call.1} parent=55 // pred_fallthru
          _
        %s452 = sand.u32 %s31, 1
        %s453 = scalar_lea.sflag [#allocation8], %s452
        %s454 = sand.u32 %s84, 1
        %s455 = smul.addr %s454, 256
        %s456 = scalar_lea.vmem [#allocation7], %s455
        // Predicated region
        $region61: #{tpu_custom_call.1} parent=55 // pred_check
          %p457 = pneg %p97
        $region62: #{tpu_custom_call.1} parent=55 // pred_check_branch
          %459 = sbr.rel (%p457) target = $region64
        $region63: #{tpu_custom_call.1} parent=55 // pred_region
          %460 = dma.done %s453, 4096
        $region64: #{tpu_custom_call.1} parent=55 // pred_fallthru
          _
        %s461 = sand.u32 %s31, 1
        %s462 = scalar_lea.sflag [#allocation8], %s461
        %s463 = sand.u32 %s136, 1
        %s464 = smul.addr %s463, 256
        %s465 = scalar_lea.vmem [#allocation9], %s464
        // Predicated region
        $region65: #{tpu_custom_call.1} parent=55 // pred_check
          %p466 = pneg %p149
        $region66: #{tpu_custom_call.1} parent=55 // pred_check_branch
          %468 = sbr.rel (%p466) target = $region68
        $region67: #{tpu_custom_call.1} parent=55 // pred_region
          %469 = dma.done %s462, 4096
        $region68: #{tpu_custom_call.1} parent=55 // pred_fallthru
          _
        %s470 = sand.u32 %s31, 1
        %s471 = scalar_lea.sflag [#allocation11], %s470
        %s472 = sand.u32 %s188, 1
        %s473 = smul.addr %s472, 256
        %s474 = scalar_lea.vmem [#allocation10], %s473
        // Predicated region
        $region69: #{tpu_custom_call.1} parent=55 // pred_check
          %p475 = pneg %p201
        $region70: #{tpu_custom_call.1} parent=55 // pred_check_branch
          %477 = sbr.rel (%p475) target = $region72
        $region71: #{tpu_custom_call.1} parent=55 // pred_region
          %478 = dma.done %s471, 4096
        $region72: #{tpu_custom_call.1} parent=55 // pred_fallthru
          _
        // Predicated region
        $region73: #{tpu_custom_call.1} parent=55 // pred_check
          %p479 = pneg %p248
        $region74: #{tpu_custom_call.1} parent=55 // pred_check_branch
          %481 = sbr.rel (%p479) target = $region76
        $region75: #{tpu_custom_call.1} parent=55 // pred_region
          %482 = dma.done [#allocation11], 4096
        $region76: #{tpu_custom_call.1} parent=55 // pred_fallthru
          _
        // Predicated region
        $region77: #{tpu_custom_call.1} parent=55 // pred_check
          %p483 = pneg %p269
        $region78: #{tpu_custom_call.1} parent=55 // pred_check_branch
          %485 = sbr.rel (%p483) target = $region80
        $region79: #{tpu_custom_call.1} parent=55 // pred_region
          %486 = dma.done [#allocation14], 4096
        $region80: #{tpu_custom_call.1} parent=55 // pred_fallthru
          _
        %p487 = pneg %p71
        %p488 = pneg %p68
        %s489 = sand.u32 %s31, 1
        %s490 = scalar_lea.sflag [#allocation8], %s489
        %s491 = sand.u32 %s84, 1
        %s492 = smul.addr %s491, 256
        %s493 = scalar_lea.vmem [#allocation7], %s492
        %p494 = pneg %p97
        %p495 = pneg %p94
        %p496 = scmp.lt.s32.totalorder %s37, 1
        %s497 = scalar_select %p496, %s37, 1
        %s498 = scalar_lea.vmem %s2, %s497
        %p499 = pneg %p123
        %p500 = pneg %p120
        %s501 = sand.u32 %s31, 1
        %s502 = scalar_lea.sflag [#allocation8], %s501
        %s503 = sand.u32 %s136, 1
        %s504 = smul.addr %s503, 256
        %s505 = scalar_lea.vmem [#allocation9], %s504
        %p506 = pneg %p149
        %p507 = pneg %p146
        %p508 = scmp.lt.s32.totalorder %s37, 1
        %s509 = scalar_select %p508, %s37, 1
        %s510 = scalar_lea.vmem %s4, %s509
        %p511 = pneg %p175
        %p512 = pneg %p172
        %s513 = sand.u32 %s31, 1
        %s514 = scalar_lea.sflag [#allocation11], %s513
        %s515 = sand.u32 %s188, 1
        %s516 = smul.addr %s515, 256
        %s517 = scalar_lea.vmem [#allocation10], %s516
        %p518 = pneg %p201
        %p519 = pneg %p198
        %p520 = scmp.lt.s32.totalorder %s37, 1
        %s521 = scalar_select %p520, %s37, 1
        %s522 = scalar_lea.vmem %s6, %s521
        %p523 = pneg %p227
        %p524 = pneg %p224
        %p525 = pneg %p248
        %p526 = pneg %p245
        %p527 = pneg %p269
        %p528 = pneg %p266
        %p529 = pneg %p299
        %p530 = pneg %p296
        %s531 = sand.u32 %s286, 1
        %s532 = scalar_lea.sflag [#allocation6], %s531
        %s533 = sand.u32 %s286, 1
        %s534 = smul.addr %s533, 128
        %s535 = scalar_lea.vmem [#allocation15], %s534
        %p536 = scmp.lt.s32.totalorder %s37, 1
        %s537 = scalar_select %p536, %s37, 1
        %s538 = scalar_lea.vmem %s2, %s537
        %p539 = scmp.lt.s32.totalorder %s37, 1
        %s540 = scalar_select %p539, %s37, 1
        %s541 = scalar_lea.vmem %s4, %s540
        %p542 = scmp.lt.s32.totalorder %s37, 1
        %s543 = scalar_select %p542, %s37, 1
        %s544 = scalar_lea.vmem %s6, %s543
        %s545 = smul.u32 16, %s38
        %p546 = scmp.eq.s32.totalorder %s38, 0
        // Predicated region
        $region81: #{tpu_custom_call.1} parent=55 // pred_check
          %p547 = pneg %p546
        $region82: #{tpu_custom_call.1} parent=55 // pred_check_branch
          %549 = sbr.rel (%p547) target = $region84
        $region83: #{tpu_custom_call.1} parent=55 // pred_region
          %v550 = vld [vmem:[#allocation4] sm:$0xff]
          %v551 = vld [vmem:[#allocation4 + $0x8] sm:$0xff]
          %v552 = vld [vmem:[#allocation4 + $0x10] sm:$0xff]
          %v553 = vld [vmem:[#allocation4 + $0x18] sm:$0xff]
          %v554 = vld [vmem:[#allocation4 + $0x20] sm:$0xff]
          %v555 = vld [vmem:[#allocation4 + $0x28] sm:$0xff]
          %v556 = vld [vmem:[#allocation4 + $0x30] sm:$0xff]
          %v557 = vld [vmem:[#allocation4 + $0x38] sm:$0xff]
          %v558 = vld [vmem:[#allocation4 + $0x40] sm:$0xff]
          %v559 = vld [vmem:[#allocation4 + $0x48] sm:$0xff]
          %v560 = vld [vmem:[#allocation4 + $0x50] sm:$0xff]
          %v561 = vld [vmem:[#allocation4 + $0x58] sm:$0xff]
          %v562 = vld [vmem:[#allocation4 + $0x60] sm:$0xff]
          %v563 = vld [vmem:[#allocation4 + $0x68] sm:$0xff]
          %v564 = vld [vmem:[#allocation4 + $0x70] sm:$0xff]
          %v565 = vld [vmem:[#allocation4 + $0x78] sm:$0xff]
          %v566 = vld [vmem:[#allocation4 + $0x80] sm:$0xff]
          %v567 = vld [vmem:[#allocation4 + $0x88] sm:$0xff]
          %v568 = vld [vmem:[#allocation4 + $0x90] sm:$0xff]
          %v569 = vld [vmem:[#allocation4 + $0x98] sm:$0xff]
          %v570 = vld [vmem:[#allocation4 + $0xa0] sm:$0xff]
          %v571 = vld [vmem:[#allocation4 + $0xa8] sm:$0xff]
          %v572 = vld [vmem:[#allocation4 + $0xb0] sm:$0xff]
          %v573 = vld [vmem:[#allocation4 + $0xb8] sm:$0xff]
          %v574 = vld [vmem:[#allocation4 + $0xc0] sm:$0xff]
          %v575 = vld [vmem:[#allocation4 + $0xc8] sm:$0xff]
          %v576 = vld [vmem:[#allocation4 + $0xd0] sm:$0xff]
          %v577 = vld [vmem:[#allocation4 + $0xd8] sm:$0xff]
          %v578 = vld [vmem:[#allocation4 + $0xe0] sm:$0xff]
          %v579 = vld [vmem:[#allocation4 + $0xe8] sm:$0xff]
          %v580 = vld [vmem:[#allocation4 + $0xf0] sm:$0xff]
          %v581 = vld [vmem:[#allocation4 + $0xf8] sm:$0xff]
          %v582 = vld [vmem:[#allocation4 + $0x100] sm:$0xff]
          %v583 = vld [vmem:[#allocation4 + $0x108] sm:$0xff]
          %v584 = vld [vmem:[#allocation4 + $0x110] sm:$0xff]
          %v585 = vld [vmem:[#allocation4 + $0x118] sm:$0xff]
          %v586 = vld [vmem:[#allocation4 + $0x120] sm:$0xff]
          %v587 = vld [vmem:[#allocation4 + $0x128] sm:$0xff]
          %v588 = vld [vmem:[#allocation4 + $0x130] sm:$0xff]
          %v589 = vld [vmem:[#allocation4 + $0x138] sm:$0xff]
          %v590 = vld [vmem:[#allocation4 + $0x140] sm:$0xff]
          %v591 = vld [vmem:[#allocation4 + $0x148] sm:$0xff]
          %v592 = vld [vmem:[#allocation4 + $0x150] sm:$0xff]
          %v593 = vld [vmem:[#allocation4 + $0x158] sm:$0xff]
          %v594 = vld [vmem:[#allocation4 + $0x160] sm:$0xff]
          %v595 = vld [vmem:[#allocation4 + $0x168] sm:$0xff]
          %v596 = vld [vmem:[#allocation4 + $0x170] sm:$0xff]
          %v597 = vld [vmem:[#allocation4 + $0x178] sm:$0xff]
          %v598 = vld [vmem:[#allocation4 + $0x180] sm:$0xff]
          %v599 = vld [vmem:[#allocation4 + $0x188] sm:$0xff]
          %v600 = vld [vmem:[#allocation4 + $0x190] sm:$0xff]
          %v601 = vld [vmem:[#allocation4 + $0x198] sm:$0xff]
          %v602 = vld [vmem:[#allocation4 + $0x1a0] sm:$0xff]
          %v603 = vld [vmem:[#allocation4 + $0x1a8] sm:$0xff]
          %v604 = vld [vmem:[#allocation4 + $0x1b0] sm:$0xff]
          %v605 = vld [vmem:[#allocation4 + $0x1b8] sm:$0xff]
          %v606 = vld [vmem:[#allocation4 + $0x1c0] sm:$0xff]
          %v607 = vld [vmem:[#allocation4 + $0x1c8] sm:$0xff]
          %v608 = vld [vmem:[#allocation4 + $0x1d0] sm:$0xff]
          %v609 = vld [vmem:[#allocation4 + $0x1d8] sm:$0xff]
          %v610 = vld [vmem:[#allocation4 + $0x1e0] sm:$0xff]
          %v611 = vld [vmem:[#allocation4 + $0x1e8] sm:$0xff]
          %v612 = vld [vmem:[#allocation4 + $0x1f0] sm:$0xff]
          %v613 = vld [vmem:[#allocation4 + $0x1f8] sm:$0xff]
          %v614 = vld [vmem:[%s465] sm:$0xff]
          %v615 = vld [vmem:[%s465 + $0x8] sm:$0xff]
          %v616 = vld [vmem:[%s465 + $0x10] sm:$0xff]
          %v617 = vld [vmem:[%s465 + $0x18] sm:$0xff]
          %v618 = vld [vmem:[%s465 + $0x20] sm:$0xff]
          %v619 = vld [vmem:[%s465 + $0x28] sm:$0xff]
          %v620 = vld [vmem:[%s465 + $0x30] sm:$0xff]
          %v621 = vld [vmem:[%s465 + $0x38] sm:$0xff]
          %v622 = vld [vmem:[%s465 + $0x40] sm:$0xff]
          %v623 = vld [vmem:[%s465 + $0x48] sm:$0xff]
          %v624 = vld [vmem:[%s465 + $0x50] sm:$0xff]
          %v625 = vld [vmem:[%s465 + $0x58] sm:$0xff]
          %v626 = vld [vmem:[%s465 + $0x60] sm:$0xff]
          %v627 = vld [vmem:[%s465 + $0x68] sm:$0xff]
          %v628 = vld [vmem:[%s465 + $0x70] sm:$0xff]
          %v629 = vld [vmem:[%s465 + $0x78] sm:$0xff]
          %v630 = vld [vmem:[%s465 + $0x80] sm:$0xff]
          %v631 = vld [vmem:[%s465 + $0x88] sm:$0xff]
          %v632 = vld [vmem:[%s465 + $0x90] sm:$0xff]
          %v633 = vld [vmem:[%s465 + $0x98] sm:$0xff]
          %v634 = vld [vmem:[%s465 + $0xa0] sm:$0xff]
          %v635 = vld [vmem:[%s465 + $0xa8] sm:$0xff]
          %v636 = vld [vmem:[%s465 + $0xb0] sm:$0xff]
          %v637 = vld [vmem:[%s465 + $0xb8] sm:$0xff]
          %v638 = vld [vmem:[%s465 + $0xc0] sm:$0xff]
          %v639 = vld [vmem:[%s465 + $0xc8] sm:$0xff]
          %v640 = vld [vmem:[%s465 + $0xd0] sm:$0xff]
          %v641 = vld [vmem:[%s465 + $0xd8] sm:$0xff]
          %v642 = vld [vmem:[%s465 + $0xe0] sm:$0xff]
          %v643 = vld [vmem:[%s465 + $0xe8] sm:$0xff]
          %v644 = vld [vmem:[%s465 + $0xf0] sm:$0xff]
          %v645 = vld [vmem:[%s465 + $0xf8] sm:$0xff]
          %v646 = vld [vmem:[%s541] sm:$0x1]
          %v648 = vlaneseq
          %v649 = vshrl.u32 %v648, 7
          %v650 = vsub.s32 0, %v649
          %v651 = vrot.slane %v646, %v650
          %653 = vmatprep.subr.mxu0 0.0
          %654 = vmatpush1.msra.mxu0 %v614
          %655 = vmatprep.subr.mxu0 0.0
          %656 = vmatpush1.msra.mxu0 %v615
          %657 = vmatprep.subr.mxu0 0.0
          %658 = vmatpush1.msra.mxu0 %v616
          %659 = vmatprep.subr.mxu0 0.0
          %660 = vmatpush1.msra.mxu0 %v617
          %661 = vmatprep.subr.mxu0 0.0
          %662 = vmatpush1.msra.mxu0 %v618
          %663 = vmatprep.subr.mxu0 0.0
          %664 = vmatpush1.msra.mxu0 %v619
          %665 = vmatprep.subr.mxu0 0.0
          %666 = vmatpush1.msra.mxu0 %v620
          %667 = vmatprep.subr.mxu0 0.0
          %668 = vmatpush1.msra.mxu0 %v621
          %669 = vmatprep.subr.mxu0 0.0
          %670 = vmatpush1.msra.mxu0 %v622
          %671 = vmatprep.subr.mxu0 0.0
          %672 = vmatpush1.msra.mxu0 %v623
          %673 = vmatprep.subr.mxu0 0.0
          %674 = vmatpush1.msra.mxu0 %v624
          %675 = vmatprep.subr.mxu0 0.0
          %676 = vmatpush1.msra.mxu0 %v625
          %677 = vmatprep.subr.mxu0 0.0
          %678 = vmatpush1.msra.mxu0 %v626
          %679 = vmatprep.subr.mxu0 0.0
          %680 = vmatpush1.msra.mxu0 %v627
          %681 = vmatprep.subr.mxu0 0.0
          %682 = vmatpush1.msra.mxu0 %v628
          %683 = vmatprep.subr.mxu0 0.0
          %684 = vmatpush1.msra.mxu0 %v629
          %685 = vmatprep.subr.mxu0 0.0
          %686 = vmatpush1.msra.mxu0 %v630
          %687 = vmatprep.subr.mxu0 0.0
          %688 = vmatpush1.msra.mxu0 %v631
          %689 = vmatprep.subr.mxu0 0.0
          %690 = vmatpush1.msra.mxu0 %v632
          %691 = vmatprep.subr.mxu0 0.0
          %692 = vmatpush1.msra.mxu0 %v633
          %693 = vmatprep.subr.mxu0 0.0
          %694 = vmatpush1.msra.mxu0 %v634
          %695 = vmatprep.subr.mxu0 0.0
          %696 = vmatpush1.msra.mxu0 %v635
          %697 = vmatprep.subr.mxu0 0.0
          %698 = vmatpush1.msra.mxu0 %v636
          %699 = vmatprep.subr.mxu0 0.0
          %700 = vmatpush1.msra.mxu0 %v637
          %701 = vmatprep.subr.mxu0 0.0
          %702 = vmatpush1.msra.mxu0 %v638
          %703 = vmatprep.subr.mxu0 0.0
          %704 = vmatpush1.msra.mxu0 %v639
          %705 = vmatprep.subr.mxu0 0.0
          %706 = vmatpush1.msra.mxu0 %v640
          %707 = vmatprep.subr.mxu0 0.0
          %708 = vmatpush1.msra.mxu0 %v641
          %709 = vmatprep.subr.mxu0 0.0
          %710 = vmatpush1.msra.mxu0 %v642
          %711 = vmatprep.subr.mxu0 0.0
          %712 = vmatpush1.msra.mxu0 %v643
          %713 = vmatprep.subr.mxu0 0.0
          %714 = vmatpush1.msra.mxu0 %v644
          %715 = vmatprep.subr.mxu0 0.0
          %716 = vmatpush1.msra.mxu0 %v645
          %717 = vmatprep.mubr.f32.mxu0 %v551
          %718 = vmatmul.mubr.f32.gmra.mrb[0].mxu0 %v550
          %v719 = vpop.f32.mrb[0].mxu0
          %v720 = vadd.f32 %v651, %v719
          %v721 = vpop.f32.mrb[0].mxu0
          %722 = vmatprep.mubr.f32.mxu0 %v553
          %723 = vmatmul.mubr.f32.gmra.mrb[0].mxu0 %v552
          %v724 = vpop.f32.mrb[0].mxu0
          %v725 = vadd.f32 %v651, %v724
          %v726 = vpop.f32.mrb[0].mxu0
          %727 = vmatprep.mubr.f32.mxu0 %v555
          %728 = vmatmul.mubr.f32.gmra.mrb[0].mxu0 %v554
          %v729 = vpop.f32.mrb[0].mxu0
          %v730 = vadd.f32 %v651, %v729
          %v731 = vpop.f32.mrb[0].mxu0
          %732 = vmatprep.mubr.f32.mxu0 %v557
          %733 = vmatmul.mubr.f32.gmra.mrb[0].mxu0 %v556
          %v734 = vpop.f32.mrb[0].mxu0
          %v735 = vadd.f32 %v651, %v734
          %v736 = vpop.f32.mrb[0].mxu0
          %737 = vmatprep.mubr.f32.mxu0 %v559
          %738 = vmatmul.mubr.f32.gmra.mrb[0].mxu0 %v558
          %v739 = vpop.f32.mrb[0].mxu0
          %v740 = vadd.f32 %v651, %v739
          %v741 = vpop.f32.mrb[0].mxu0
          %742 = vmatprep.mubr.f32.mxu0 %v561
          %743 = vmatmul.mubr.f32.gmra.mrb[0].mxu0 %v560
          %v744 = vpop.f32.mrb[0].mxu0
          %v745 = vadd.f32 %v651, %v744
          %v746 = vpop.f32.mrb[0].mxu0
          %747 = vmatprep.mubr.f32.mxu0 %v563
          %748 = vmatmul.mubr.f32.gmra.mrb[0].mxu0 %v562
          %v749 = vpop.f32.mrb[0].mxu0
          %v750 = vadd.f32 %v651, %v749
          %v751 = vpop.f32.mrb[0].mxu0
          %752 = vmatprep.mubr.f32.mxu0 %v565
          %753 = vmatmul.mubr.f32.gmra.mrb[0].mxu0 %v564
          %v754 = vpop.f32.mrb[0].mxu0
          %v755 = vadd.f32 %v651, %v754
          %v756 = vpop.f32.mrb[0].mxu0
          %757 = vmatprep.mubr.f32.mxu0 %v567
          %758 = vmatmul.mubr.f32.gmra.mrb[0].mxu0 %v566
          %v759 = vpop.f32.mrb[0].mxu0
          %v760 = vadd.f32 %v651, %v759
          %v761 = vpop.f32.mrb[0].mxu0
          %762 = vmatprep.mubr.f32.mxu0 %v569
          %763 = vmatmul.mubr.f32.gmra.mrb[0].mxu0 %v568
          %v764 = vpop.f32.mrb[0].mxu0
          %v765 = vadd.f32 %v651, %v764
          %v766 = vpop.f32.mrb[0].mxu0
          %767 = vmatprep.mubr.f32.mxu0 %v571
          %768 = vmatmul.mubr.f32.gmra.mrb[0].mxu0 %v570
          %v769 = vpop.f32.mrb[0].mxu0
          %v770 = vadd.f32 %v651, %v769
          %v771 = vpop.f32.mrb[0].mxu0
          %772 = vmatprep.mubr.f32.mxu0 %v573
          %773 = vmatmul.mubr.f32.gmra.mrb[0].mxu0 %v572
          %v774 = vpop.f32.mrb[0].mxu0
          %v775 = vadd.f32 %v651, %v774
          %v776 = vpop.f32.mrb[0].mxu0
          %777 = vmatprep.mubr.f32.mxu0 %v575
          %778 = vmatmul.mubr.f32.gmra.mrb[0].mxu0 %v574
          %v779 = vpop.f32.mrb[0].mxu0
          %v780 = vadd.f32 %v651, %v779
          %v781 = vpop.f32.mrb[0].mxu0
          %782 = vmatprep.mubr.f32.mxu0 %v577
          %783 = vmatmul.mubr.f32.gmra.mrb[0].mxu0 %v576
          %v784 = vpop.f32.mrb[0].mxu0
          %v785 = vadd.f32 %v651, %v784
          %v786 = vpop.f32.mrb[0].mxu0
          %787 = vmatprep.mubr.f32.mxu0 %v579
          %788 = vmatmul.mubr.f32.gmra.mrb[0].mxu0 %v578
          %v789 = vpop.f32.mrb[0].mxu0
          %v790 = vadd.f32 %v651, %v789
          %v791 = vpop.f32.mrb[0].mxu0
          %792 = vmatprep.mubr.f32.mxu0 %v581
          %793 = vmatmul.mubr.f32.gmra.mrb[0].mxu0 %v580
          %v794 = vpop.f32.mrb[0].mxu0
          %v795 = vadd.f32 %v651, %v794
          %v796 = vpop.f32.mrb[0].mxu0
          %797 = vmatprep.mubr.f32.mxu0 %v583
          %798 = vmatmul.mubr.f32.gmra.mrb[0].mxu0 %v582
          %v799 = vpop.f32.mrb[0].mxu0
          %v800 = vadd.f32 %v651, %v799
          %v801 = vpop.f32.mrb[0].mxu0
          %802 = vmatprep.mubr.f32.mxu0 %v585
          %803 = vmatmul.mubr.f32.gmra.mrb[0].mxu0 %v584
          %v804 = vpop.f32.mrb[0].mxu0
          %v805 = vadd.f32 %v651, %v804
          %v806 = vpop.f32.mrb[0].mxu0
          %807 = vmatprep.mubr.f32.mxu0 %v587
          %808 = vmatmul.mubr.f32.gmra.mrb[0].mxu0 %v586
          %v809 = vpop.f32.mrb[0].mxu0
          %v810 = vadd.f32 %v651, %v809
          %v811 = vpop.f32.mrb[0].mxu0
          %812 = vmatprep.mubr.f32.mxu0 %v589
          %813 = vmatmul.mubr.f32.gmra.mrb[0].mxu0 %v588
          %v814 = vpop.f32.mrb[0].mxu0
          %v815 = vadd.f32 %v651, %v814
          %v816 = vpop.f32.mrb[0].mxu0
          %817 = vmatprep.mubr.f32.mxu0 %v591
          %818 = vmatmul.mubr.f32.gmra.mrb[0].mxu0 %v590
          %v819 = vpop.f32.mrb[0].mxu0
          %v820 = vadd.f32 %v651, %v819
          %v821 = vpop.f32.mrb[0].mxu0
          %822 = vmatprep.mubr.f32.mxu0 %v593
          %823 = vmatmul.mubr.f32.gmra.mrb[0].mxu0 %v592
          %v824 = vpop.f32.mrb[0].mxu0
          %v825 = vadd.f32 %v651, %v824
          %v826 = vpop.f32.mrb[0].mxu0
          %827 = vmatprep.mubr.f32.mxu0 %v595
          %828 = vmatmul.mubr.f32.gmra.mrb[0].mxu0 %v594
          %v829 = vpop.f32.mrb[0].mxu0
          %v830 = vadd.f32 %v651, %v829
          %v831 = vpop.f32.mrb[0].mxu0
          %832 = vmatprep.mubr.f32.mxu0 %v597
          %833 = vmatmul.mubr.f32.gmra.mrb[0].mxu0 %v596
          %v834 = vpop.f32.mrb[0].mxu0
          %v835 = vadd.f32 %v651, %v834
          %v836 = vpop.f32.mrb[0].mxu0
          %837 = vmatprep.mubr.f32.mxu0 %v599
          %838 = vmatmul.mubr.f32.gmra.mrb[0].mxu0 %v598
          %v839 = vpop.f32.mrb[0].mxu0
          %v840 = vadd.f32 %v651, %v839
          %v841 = vpop.f32.mrb[0].mxu0
          %842 = vmatprep.mubr.f32.mxu0 %v601
          %843 = vmatmul.mubr.f32.gmra.mrb[0].mxu0 %v600
          %v844 = vpop.f32.mrb[0].mxu0
          %v845 = vadd.f32 %v651, %v844
          %v846 = vpop.f32.mrb[0].mxu0
          %847 = vmatprep.mubr.f32.mxu0 %v603
          %848 = vmatmul.mubr.f32.gmra.mrb[0].mxu0 %v602
          %v849 = vpop.f32.mrb[0].mxu0
          %v850 = vadd.f32 %v651, %v849
          %v851 = vpop.f32.mrb[0].mxu0
          %852 = vmatprep.mubr.f32.mxu0 %v605
          %853 = vmatmul.mubr.f32.gmra.mrb[0].mxu0 %v604
          %v854 = vpop.f32.mrb[0].mxu0
          %v855 = vadd.f32 %v651, %v854
          %v856 = vpop.f32.mrb[0].mxu0
          %857 = vmatprep.mubr.f32.mxu0 %v607
          %858 = vmatmul.mubr.f32.gmra.mrb[0].mxu0 %v606
          %v859 = vpop.f32.mrb[0].mxu0
          %v860 = vadd.f32 %v651, %v859
          %v861 = vpop.f32.mrb[0].mxu0
          %862 = vmatprep.mubr.f32.mxu0 %v609
          %863 = vmatmul.mubr.f32.gmra.mrb[0].mxu0 %v608
          %v864 = vpop.f32.mrb[0].mxu0
          %v865 = vadd.f32 %v651, %v864
          %v866 = vpop.f32.mrb[0].mxu0
          %867 = vmatprep.mubr.f32.mxu0 %v611
          %868 = vmatmul.mubr.f32.gmra.mrb[0].mxu0 %v610
          %v869 = vpop.f32.mrb[0].mxu0
          %v870 = vadd.f32 %v651, %v869
          %v871 = vpop.f32.mrb[0].mxu0
          %872 = vmatprep.mubr.f32.mxu0 %v613
          %873 = vmatmul.mubr.f32.gmra.mrb[0].mxu0 %v612
          %v874 = vpop.f32.mrb[0].mxu0
          %v875 = vadd.f32 %v651, %v874
          %v876 = vpop.f32.mrb[0].mxu0
          %877 = vdwg.mxu0
          %v878 = vld [vmem:[%s474] sm:$0xff]
          %v879 = vld [vmem:[%s474 + $0x8] sm:$0xff]
          %v880 = vld [vmem:[%s474 + $0x10] sm:$0xff]
          %v881 = vld [vmem:[%s474 + $0x18] sm:$0xff]
          %v882 = vld [vmem:[%s474 + $0x20] sm:$0xff]
          %v883 = vld [vmem:[%s474 + $0x28] sm:$0xff]
          %v884 = vld [vmem:[%s474 + $0x30] sm:$0xff]
          %v885 = vld [vmem:[%s474 + $0x38] sm:$0xff]
          %v886 = vld [vmem:[%s474 + $0x40] sm:$0xff]
          %v887 = vld [vmem:[%s474 + $0x48] sm:$0xff]
          %v888 = vld [vmem:[%s474 + $0x50] sm:$0xff]
          %v889 = vld [vmem:[%s474 + $0x58] sm:$0xff]
          %v890 = vld [vmem:[%s474 + $0x60] sm:$0xff]
          %v891 = vld [vmem:[%s474 + $0x68] sm:$0xff]
          %v892 = vld [vmem:[%s474 + $0x70] sm:$0xff]
          %v893 = vld [vmem:[%s474 + $0x78] sm:$0xff]
          %v894 = vld [vmem:[%s474 + $0x80] sm:$0xff]
          %v895 = vld [vmem:[%s474 + $0x88] sm:$0xff]
          %v896 = vld [vmem:[%s474 + $0x90] sm:$0xff]
          %v897 = vld [vmem:[%s474 + $0x98] sm:$0xff]
          %v898 = vld [vmem:[%s474 + $0xa0] sm:$0xff]
          %v899 = vld [vmem:[%s474 + $0xa8] sm:$0xff]
          %v900 = vld [vmem:[%s474 + $0xb0] sm:$0xff]
          %v901 = vld [vmem:[%s474 + $0xb8] sm:$0xff]
          %v902 = vld [vmem:[%s474 + $0xc0] sm:$0xff]
          %v903 = vld [vmem:[%s474 + $0xc8] sm:$0xff]
          %v904 = vld [vmem:[%s474 + $0xd0] sm:$0xff]
          %v905 = vld [vmem:[%s474 + $0xd8] sm:$0xff]
          %v906 = vld [vmem:[%s474 + $0xe0] sm:$0xff]
          %v907 = vld [vmem:[%s474 + $0xe8] sm:$0xff]
          %v908 = vld [vmem:[%s474 + $0xf0] sm:$0xff]
          %v909 = vld [vmem:[%s474 + $0xf8] sm:$0xff]
          %v910 = vld [vmem:[%s544] sm:$0x1]
          %v912 = vlaneseq
          %v913 = vshrl.u32 %v912, 7
          %v914 = vsub.s32 0, %v913
          %v915 = vrot.slane %v910, %v914
          %917 = vmatprep.subr.mxu0 0.0
          %918 = vmatpush1.msra.mxu0 %v878
          %919 = vmatprep.subr.mxu0 0.0
          %920 = vmatpush1.msra.mxu0 %v879
          %921 = vmatprep.subr.mxu0 0.0
          %922 = vmatpush1.msra.mxu0 %v880
          %923 = vmatprep.subr.mxu0 0.0
          %924 = vmatpush1.msra.mxu0 %v881
          %925 = vmatprep.subr.mxu0 0.0
          %926 = vmatpush1.msra.mxu0 %v882
          %927 = vmatprep.subr.mxu0 0.0
          %928 = vmatpush1.msra.mxu0 %v883
          %929 = vmatprep.subr.mxu0 0.0
          %930 = vmatpush1.msra.mxu0 %v884
          %931 = vmatprep.subr.mxu0 0.0
          %932 = vmatpush1.msra.mxu0 %v885
          %933 = vmatprep.subr.mxu0 0.0
          %934 = vmatpush1.msra.mxu0 %v886
          %935 = vmatprep.subr.mxu0 0.0
          %936 = vmatpush1.msra.mxu0 %v887
          %937 = vmatprep.subr.mxu0 0.0
          %938 = vmatpush1.msra.mxu0 %v888
          %939 = vmatprep.subr.mxu0 0.0
          %940 = vmatpush1.msra.mxu0 %v889
          %941 = vmatprep.subr.mxu0 0.0
          %942 = vmatpush1.msra.mxu0 %v890
          %943 = vmatprep.subr.mxu0 0.0
          %944 = vmatpush1.msra.mxu0 %v891
          %945 = vmatprep.subr.mxu0 0.0
          %946 = vmatpush1.msra.mxu0 %v892
          %947 = vmatprep.subr.mxu0 0.0
          %948 = vmatpush1.msra.mxu0 %v893
          %949 = vmatprep.subr.mxu0 0.0
          %950 = vmatpush1.msra.mxu0 %v894
          %951 = vmatprep.subr.mxu0 0.0
          %952 = vmatpush1.msra.mxu0 %v895
          %953 = vmatprep.subr.mxu0 0.0
          %954 = vmatpush1.msra.mxu0 %v896
          %955 = vmatprep.subr.mxu0 0.0
          %956 = vmatpush1.msra.mxu0 %v897
          %957 = vmatprep.subr.mxu0 0.0
          %958 = vmatpush1.msra.mxu0 %v898
          %959 = vmatprep.subr.mxu0 0.0
          %960 = vmatpush1.msra.mxu0 %v899
          %961 = vmatprep.subr.mxu0 0.0
          %962 = vmatpush1.msra.mxu0 %v900
          %963 = vmatprep.subr.mxu0 0.0
          %964 = vmatpush1.msra.mxu0 %v901
          %965 = vmatprep.subr.mxu0 0.0
          %966 = vmatpush1.msra.mxu0 %v902
          %967 = vmatprep.subr.mxu0 0.0
          %968 = vmatpush1.msra.mxu0 %v903
          %969 = vmatprep.subr.mxu0 0.0
          %970 = vmatpush1.msra.mxu0 %v904
          %971 = vmatprep.subr.mxu0 0.0
          %972 = vmatpush1.msra.mxu0 %v905
          %973 = vmatprep.subr.mxu0 0.0
          %974 = vmatpush1.msra.mxu0 %v906
          %975 = vmatprep.subr.mxu0 0.0
          %976 = vmatpush1.msra.mxu0 %v907
          %977 = vmatprep.subr.mxu0 0.0
          %978 = vmatpush1.msra.mxu0 %v908
          %979 = vmatprep.subr.mxu0 0.0
          %980 = vmatpush1.msra.mxu0 %v909
          %981 = vmatprep.mubr.f32.mxu0 %v551
          %982 = vmatmul.mubr.f32.gmra.mrb[0].mxu0 %v550
          %v983 = vpop.f32.mrb[0].mxu0
          %v984 = vadd.f32 %v915, %v983
          %v985 = vpop.f32.mrb[0].mxu0
          %986 = vmatprep.mubr.f32.mxu0 %v553
          %987 = vmatmul.mubr.f32.gmra.mrb[0].mxu0 %v552
          %v988 = vpop.f32.mrb[0].mxu0
          %v989 = vadd.f32 %v915, %v988
          %v990 = vpop.f32.mrb[0].mxu0
          %991 = vmatprep.mubr.f32.mxu0 %v555
          %992 = vmatmul.mubr.f32.gmra.mrb[0].mxu0 %v554
          %v993 = vpop.f32.mrb[0].mxu0
          %v994 = vadd.f32 %v915, %v993
          %v995 = vpop.f32.mrb[0].mxu0
          %996 = vmatprep.mubr.f32.mxu0 %v557
          %997 = vmatmul.mubr.f32.gmra.mrb[0].mxu0 %v556
          %v998 = vpop.f32.mrb[0].mxu0
          %v999 = vadd.f32 %v915, %v998
          %v1000 = vpop.f32.mrb[0].mxu0
          %1001 = vmatprep.mubr.f32.mxu0 %v559
          %1002 = vmatmul.mubr.f32.gmra.mrb[0].mxu0 %v558
          %v1003 = vpop.f32.mrb[0].mxu0
          %v1004 = vadd.f32 %v915, %v1003
          %v1005 = vpop.f32.mrb[0].mxu0
          %1006 = vmatprep.mubr.f32.mxu0 %v561
          %1007 = vmatmul.mubr.f32.gmra.mrb[0].mxu0 %v560
          %v1008 = vpop.f32.mrb[0].mxu0
          %v1009 = vadd.f32 %v915, %v1008
          %v1010 = vpop.f32.mrb[0].mxu0
          %1011 = vmatprep.mubr.f32.mxu0 %v563
          %1012 = vmatmul.mubr.f32.gmra.mrb[0].mxu0 %v562
          %v1013 = vpop.f32.mrb[0].mxu0
          %v1014 = vadd.f32 %v915, %v1013
          %v1015 = vpop.f32.mrb[0].mxu0
          %1016 = vmatprep.mubr.f32.mxu0 %v565
          %1017 = vmatmul.mubr.f32.gmra.mrb[0].mxu0 %v564
          %v1018 = vpop.f32.mrb[0].mxu0
          %v1019 = vadd.f32 %v915, %v1018
          %v1020 = vpop.f32.mrb[0].mxu0
          %1021 = vmatprep.mubr.f32.mxu0 %v567
          %1022 = vmatmul.mubr.f32.gmra.mrb[0].mxu0 %v566
          %v1023 = vpop.f32.mrb[0].mxu0
          %v1024 = vadd.f32 %v915, %v1023
          %v1025 = vpop.f32.mrb[0].mxu0
          %1026 = vmatprep.mubr.f32.mxu0 %v569
          %1027 = vmatmul.mubr.f32.gmra.mrb[0].mxu0 %v568
          %v1028 = vpop.f32.mrb[0].mxu0
          %v1029 = vadd.f32 %v915, %v1028
          %v1030 = vpop.f32.mrb[0].mxu0
          %1031 = vmatprep.mubr.f32.mxu0 %v571
          %1032 = vmatmul.mubr.f32.gmra.mrb[0].mxu0 %v570
          %v1033 = vpop.f32.mrb[0].mxu0
          %v1034 = vadd.f32 %v915, %v1033
          %v1035 = vpop.f32.mrb[0].mxu0
          %1036 = vmatprep.mubr.f32.mxu0 %v573
          %1037 = vmatmul.mubr.f32.gmra.mrb[0].mxu0 %v572
          %v1038 = vpop.f32.mrb[0].mxu0
          %v1039 = vadd.f32 %v915, %v1038
          %v1040 = vpop.f32.mrb[0].mxu0
          %1041 = vmatprep.mubr.f32.mxu0 %v575
          %1042 = vmatmul.mubr.f32.gmra.mrb[0].mxu0 %v574
          %v1043 = vpop.f32.mrb[0].mxu0
          %v1044 = vadd.f32 %v915, %v1043
          %v1045 = vpop.f32.mrb[0].mxu0
          %1046 = vmatprep.mubr.f32.mxu0 %v577
          %1047 = vmatmul.mubr.f32.gmra.mrb[0].mxu0 %v576
          %v1048 = vpop.f32.mrb[0].mxu0
          %v1049 = vadd.f32 %v915, %v1048
          %v1050 = vpop.f32.mrb[0].mxu0
          %1051 = vmatprep.mubr.f32.mxu0 %v579
          %1052 = vmatmul.mubr.f32.gmra.mrb[0].mxu0 %v578
          %v1053 = vpop.f32.mrb[0].mxu0
          %v1054 = vadd.f32 %v915, %v1053
          %v1055 = vpop.f32.mrb[0].mxu0
          %1056 = vmatprep.mubr.f32.mxu0 %v581
          %1057 = vmatmul.mubr.f32.gmra.mrb[0].mxu0 %v580
          %v1058 = vpop.f32.mrb[0].mxu0
          %v1059 = vadd.f32 %v915, %v1058
          %v1060 = vpop.f32.mrb[0].mxu0
          %1061 = vmatprep.mubr.f32.mxu0 %v583
          %1062 = vmatmul.mubr.f32.gmra.mrb[0].mxu0 %v582
          %v1063 = vpop.f32.mrb[0].mxu0
          %v1064 = vadd.f32 %v915, %v1063
          %v1065 = vpop.f32.mrb[0].mxu0
          %1066 = vmatprep.mubr.f32.mxu0 %v585
          %1067 = vmatmul.mubr.f32.gmra.mrb[0].mxu0 %v584
          %v1068 = vpop.f32.mrb[0].mxu0
          %v1069 = vadd.f32 %v915, %v1068
          %v1070 = vpop.f32.mrb[0].mxu0
          %1071 = vmatprep.mubr.f32.mxu0 %v587
          %1072 = vmatmul.mubr.f32.gmra.mrb[0].mxu0 %v586
          %v1073 = vpop.f32.mrb[0].mxu0
          %v1074 = vadd.f32 %v915, %v1073
          %v1075 = vpop.f32.mrb[0].mxu0
          %1076 = vmatprep.mubr.f32.mxu0 %v589
          %1077 = vmatmul.mubr.f32.gmra.mrb[0].mxu0 %v588
          %v1078 = vpop.f32.mrb[0].mxu0
          %v1079 = vadd.f32 %v915, %v1078
          %v1080 = vpop.f32.mrb[0].mxu0
          %1081 = vmatprep.mubr.f32.mxu0 %v591
          %1082 = vmatmul.mubr.f32.gmra.mrb[0].mxu0 %v590
          %v1083 = vpop.f32.mrb[0].mxu0
          %v1084 = vadd.f32 %v915, %v1083
          %v1085 = vpop.f32.mrb[0].mxu0
          %1086 = vmatprep.mubr.f32.mxu0 %v593
          %1087 = vmatmul.mubr.f32.gmra.mrb[0].mxu0 %v592
          %v1088 = vpop.f32.mrb[0].mxu0
          %v1089 = vadd.f32 %v915, %v1088
          %v1090 = vpop.f32.mrb[0].mxu0
          %1091 = vmatprep.mubr.f32.mxu0 %v595
          %1092 = vmatmul.mubr.f32.gmra.mrb[0].mxu0 %v594
          %v1093 = vpop.f32.mrb[0].mxu0
          %v1094 = vadd.f32 %v915, %v1093
          %v1095 = vpop.f32.mrb[0].mxu0
          %1096 = vmatprep.mubr.f32.mxu0 %v597
          %1097 = vmatmul.mubr.f32.gmra.mrb[0].mxu0 %v596
          %v1098 = vpop.f32.mrb[0].mxu0
          %v1099 = vadd.f32 %v915, %v1098
          %v1100 = vpop.f32.mrb[0].mxu0
          %1101 = vmatprep.mubr.f32.mxu0 %v599
          %1102 = vmatmul.mubr.f32.gmra.mrb[0].mxu0 %v598
          %v1103 = vpop.f32.mrb[0].mxu0
          %v1104 = vadd.f32 %v915, %v1103
          %v1105 = vpop.f32.mrb[0].mxu0
          %1106 = vmatprep.mubr.f32.mxu0 %v601
          %1107 = vmatmul.mubr.f32.gmra.mrb[0].mxu0 %v600
          %v1108 = vpop.f32.mrb[0].mxu0
          %v1109 = vadd.f32 %v915, %v1108
          %v1110 = vpop.f32.mrb[0].mxu0
          %1111 = vmatprep.mubr.f32.mxu0 %v603
          %1112 = vmatmul.mubr.f32.gmra.mrb[0].mxu0 %v602
          %v1113 = vpop.f32.mrb[0].mxu0
          %v1114 = vadd.f32 %v915, %v1113
          %v1115 = vpop.f32.mrb[0].mxu0
          %1116 = vmatprep.mubr.f32.mxu0 %v605
          %1117 = vmatmul.mubr.f32.gmra.mrb[0].mxu0 %v604
          %v1118 = vpop.f32.mrb[0].mxu0
          %v1119 = vadd.f32 %v915, %v1118
          %v1120 = vpop.f32.mrb[0].mxu0
          %1121 = vmatprep.mubr.f32.mxu0 %v607
          %1122 = vmatmul.mubr.f32.gmra.mrb[0].mxu0 %v606
          %v1123 = vpop.f32.mrb[0].mxu0
          %v1124 = vadd.f32 %v915, %v1123
          %v1125 = vpop.f32.mrb[0].mxu0
          %1126 = vmatprep.mubr.f32.mxu0 %v609
          %1127 = vmatmul.mubr.f32.gmra.mrb[0].mxu0 %v608
          %v1128 = vpop.f32.mrb[0].mxu0
          %v1129 = vadd.f32 %v915, %v1128
          %v1130 = vpop.f32.mrb[0].mxu0
          %1131 = vmatprep.mubr.f32.mxu0 %v611
          %1132 = vmatmul.mubr.f32.gmra.mrb[0].mxu0 %v610
          %v1133 = vpop.f32.mrb[0].mxu0
          %v1134 = vadd.f32 %v915, %v1133
          %v1135 = vpop.f32.mrb[0].mxu0
          %1136 = vmatprep.mubr.f32.mxu0 %v613
          %1137 = vmatmul.mubr.f32.gmra.mrb[0].mxu0 %v612
          %v1138 = vpop.f32.mrb[0].mxu0
          %v1139 = vadd.f32 %v915, %v1138
          %v1140 = vpop.f32.mrb[0].mxu0
          %1141 = vdwg.mxu0
          %v1142 = vld [vmem:[#allocation12] sm:$0xff]
          %v1143 = vld [vmem:[#allocation12 + $0x8] sm:$0xff]
          %v1144 = vld [vmem:[#allocation12 + $0x10] sm:$0xff]
          %v1145 = vld [vmem:[#allocation12 + $0x18] sm:$0xff]
          %v1146 = vld [vmem:[#allocation12 + $0x20] sm:$0xff]
          %v1147 = vld [vmem:[#allocation12 + $0x28] sm:$0xff]
          %v1148 = vld [vmem:[#allocation12 + $0x30] sm:$0xff]
          %v1149 = vld [vmem:[#allocation12 + $0x38] sm:$0xff]
          %v1150 = vld [vmem:[#allocation12 + $0x40] sm:$0xff]
          %v1151 = vld [vmem:[#allocation12 + $0x48] sm:$0xff]
          %v1152 = vld [vmem:[#allocation12 + $0x50] sm:$0xff]
          %v1153 = vld [vmem:[#allocation12 + $0x58] sm:$0xff]
          %v1154 = vld [vmem:[#allocation12 + $0x60] sm:$0xff]
          %v1155 = vld [vmem:[#allocation12 + $0x68] sm:$0xff]
          %v1156 = vld [vmem:[#allocation12 + $0x70] sm:$0xff]
          %v1157 = vld [vmem:[#allocation12 + $0x78] sm:$0xff]
          %v1158 = vld [vmem:[#allocation12 + $0x80] sm:$0xff]
          %v1159 = vld [vmem:[#allocation12 + $0x88] sm:$0xff]
          %v1160 = vld [vmem:[#allocation12 + $0x90] sm:$0xff]
          %v1161 = vld [vmem:[#allocation12 + $0x98] sm:$0xff]
          %v1162 = vld [vmem:[#allocation12 + $0xa0] sm:$0xff]
          %v1163 = vld [vmem:[#allocation12 + $0xa8] sm:$0xff]
          %v1164 = vld [vmem:[#allocation12 + $0xb0] sm:$0xff]
          %v1165 = vld [vmem:[#allocation12 + $0xb8] sm:$0xff]
          %v1166 = vld [vmem:[#allocation12 + $0xc0] sm:$0xff]
          %v1167 = vld [vmem:[#allocation12 + $0xc8] sm:$0xff]
          %v1168 = vld [vmem:[#allocation12 + $0xd0] sm:$0xff]
          %v1169 = vld [vmem:[#allocation12 + $0xd8] sm:$0xff]
          %v1170 = vld [vmem:[#allocation12 + $0xe0] sm:$0xff]
          %v1171 = vld [vmem:[#allocation12 + $0xe8] sm:$0xff]
          %v1172 = vld [vmem:[#allocation12 + $0xf0] sm:$0xff]
          %v1173 = vld [vmem:[#allocation12 + $0xf8] sm:$0xff]
          %v1174 = vld [vmem:[#allocation13] sm:$0xff]
          %v1175 = vld [vmem:[#allocation13 + $0x8] sm:$0xff]
          %v1176 = vld [vmem:[#allocation13 + $0x10] sm:$0xff]
          %v1177 = vld [vmem:[#allocation13 + $0x18] sm:$0xff]
          %v1178 = vld [vmem:[#allocation13 + $0x20] sm:$0xff]
          %v1179 = vld [vmem:[#allocation13 + $0x28] sm:$0xff]
          %v1180 = vld [vmem:[#allocation13 + $0x30] sm:$0xff]
          %v1181 = vld [vmem:[#allocation13 + $0x38] sm:$0xff]
          %v1182 = vld [vmem:[#allocation13 + $0x40] sm:$0xff]
          %v1183 = vld [vmem:[#allocation13 + $0x48] sm:$0xff]
          %v1184 = vld [vmem:[#allocation13 + $0x50] sm:$0xff]
          %v1185 = vld [vmem:[#allocation13 + $0x58] sm:$0xff]
          %v1186 = vld [vmem:[#allocation13 + $0x60] sm:$0xff]
          %v1187 = vld [vmem:[#allocation13 + $0x68] sm:$0xff]
          %v1188 = vld [vmem:[#allocation13 + $0x70] sm:$0xff]
          %v1189 = vld [vmem:[#allocation13 + $0x78] sm:$0xff]
          %v1190 = vld [vmem:[#allocation13 + $0x80] sm:$0xff]
          %v1191 = vld [vmem:[#allocation13 + $0x88] sm:$0xff]
          %v1192 = vld [vmem:[#allocation13 + $0x90] sm:$0xff]
          %v1193 = vld [vmem:[#allocation13 + $0x98] sm:$0xff]
          %v1194 = vld [vmem:[#allocation13 + $0xa0] sm:$0xff]
          %v1195 = vld [vmem:[#allocation13 + $0xa8] sm:$0xff]
          %v1196 = vld [vmem:[#allocation13 + $0xb0] sm:$0xff]
          %v1197 = vld [vmem:[#allocation13 + $0xb8] sm:$0xff]
          %v1198 = vld [vmem:[#allocation13 + $0xc0] sm:$0xff]
          %v1199 = vld [vmem:[#allocation13 + $0xc8] sm:$0xff]
          %v1200 = vld [vmem:[#allocation13 + $0xd0] sm:$0xff]
          %v1201 = vld [vmem:[#allocation13 + $0xd8] sm:$0xff]
          %v1202 = vld [vmem:[#allocation13 + $0xe0] sm:$0xff]
          %v1203 = vld [vmem:[#allocation13 + $0xe8] sm:$0xff]
          %v1204 = vld [vmem:[#allocation13 + $0xf0] sm:$0xff]
          %v1205 = vld [vmem:[#allocation13 + $0xf8] sm:$0xff]
          %v1206 = vmul.f32 %v720, %v1142
          %v1207 = vmul.f32 %v725, %v1143
          %v1208 = vmul.f32 %v730, %v1144
          %v1209 = vmul.f32 %v735, %v1145
          %v1210 = vmul.f32 %v740, %v1146
          %v1211 = vmul.f32 %v745, %v1147
          %v1212 = vmul.f32 %v750, %v1148
          %v1213 = vmul.f32 %v755, %v1149
          %v1214 = vmul.f32 %v760, %v1150
          %v1215 = vmul.f32 %v765, %v1151
          %v1216 = vmul.f32 %v770, %v1152
          %v1217 = vmul.f32 %v775, %v1153
          %v1218 = vmul.f32 %v780, %v1154
          %v1219 = vmul.f32 %v785, %v1155
          %v1220 = vmul.f32 %v790, %v1156
          %v1221 = vmul.f32 %v795, %v1157
          %v1222 = vmul.f32 %v800, %v1158
          %v1223 = vmul.f32 %v805, %v1159
          %v1224 = vmul.f32 %v810, %v1160
          %v1225 = vmul.f32 %v815, %v1161
          %v1226 = vmul.f32 %v820, %v1162
          %v1227 = vmul.f32 %v825, %v1163
          %v1228 = vmul.f32 %v830, %v1164
          %v1229 = vmul.f32 %v835, %v1165
          %v1230 = vmul.f32 %v840, %v1166
          %v1231 = vmul.f32 %v845, %v1167
          %v1232 = vmul.f32 %v850, %v1168
          %v1233 = vmul.f32 %v855, %v1169
          %v1234 = vmul.f32 %v860, %v1170
          %v1235 = vmul.f32 %v865, %v1171
          %v1236 = vmul.f32 %v870, %v1172
          %v1237 = vmul.f32 %v875, %v1173
          %1270 = vrot.lane.b32.xlu0 %v720, 64
          %v1271 = vpop.permute.xlu0 %1270
          %1272 = vrot.lane.b32.xlu0 %v725, 64
          %v1273 = vpop.permute.xlu0 %1272
          %1274 = vrot.lane.b32.xlu0 %v730, 64
          %v1275 = vpop.permute.xlu0 %1274
          %1276 = vrot.lane.b32.xlu0 %v735, 64
          %v1277 = vpop.permute.xlu0 %1276
          %1278 = vrot.lane.b32.xlu0 %v740, 64
          %v1279 = vpop.permute.xlu0 %1278
          %1280 = vrot.lane.b32.xlu0 %v745, 64
          %v1281 = vpop.permute.xlu0 %1280
          %1282 = vrot.lane.b32.xlu0 %v750, 64
          %v1283 = vpop.permute.xlu0 %1282
          %1284 = vrot.lane.b32.xlu0 %v755, 64
          %v1285 = vpop.permute.xlu0 %1284
          %1286 = vrot.lane.b32.xlu0 %v760, 64
          %v1287 = vpop.permute.xlu0 %1286
          %1288 = vrot.lane.b32.xlu0 %v765, 64
          %v1289 = vpop.permute.xlu0 %1288
          %1290 = vrot.lane.b32.xlu0 %v770, 64
          %v1291 = vpop.permute.xlu0 %1290
          %1292 = vrot.lane.b32.xlu0 %v775, 64
          %v1293 = vpop.permute.xlu0 %1292
          %1294 = vrot.lane.b32.xlu0 %v780, 64
          %v1295 = vpop.permute.xlu0 %1294
          %1296 = vrot.lane.b32.xlu0 %v785, 64
          %v1297 = vpop.permute.xlu0 %1296
          %1298 = vrot.lane.b32.xlu0 %v790, 64
          %v1299 = vpop.permute.xlu0 %1298
          %1300 = vrot.lane.b32.xlu0 %v795, 64
          %v1301 = vpop.permute.xlu0 %1300
          %1302 = vrot.lane.b32.xlu0 %v800, 64
          %v1303 = vpop.permute.xlu0 %1302
          %1304 = vrot.lane.b32.xlu0 %v805, 64
          %v1305 = vpop.permute.xlu0 %1304
          %1306 = vrot.lane.b32.xlu0 %v810, 64
          %v1307 = vpop.permute.xlu0 %1306
          %1308 = vrot.lane.b32.xlu0 %v815, 64
          %v1309 = vpop.permute.xlu0 %1308
          %1310 = vrot.lane.b32.xlu0 %v820, 64
          %v1311 = vpop.permute.xlu0 %1310
          %1312 = vrot.lane.b32.xlu0 %v825, 64
          %v1313 = vpop.permute.xlu0 %1312
          %1314 = vrot.lane.b32.xlu0 %v830, 64
          %v1315 = vpop.permute.xlu0 %1314
          %1316 = vrot.lane.b32.xlu0 %v835, 64
          %v1317 = vpop.permute.xlu0 %1316
          %1318 = vrot.lane.b32.xlu0 %v840, 64
          %v1319 = vpop.permute.xlu0 %1318
          %1320 = vrot.lane.b32.xlu0 %v845, 64
          %v1321 = vpop.permute.xlu0 %1320
          %1322 = vrot.lane.b32.xlu0 %v850, 64
          %v1323 = vpop.permute.xlu0 %1322
          %1324 = vrot.lane.b32.xlu0 %v855, 64
          %v1325 = vpop.permute.xlu0 %1324
          %1326 = vrot.lane.b32.xlu0 %v860, 64
          %v1327 = vpop.permute.xlu0 %1326
          %1328 = vrot.lane.b32.xlu0 %v865, 64
          %v1329 = vpop.permute.xlu0 %1328
          %1330 = vrot.lane.b32.xlu0 %v870, 64
          %v1331 = vpop.permute.xlu0 %1330
          %1332 = vrot.lane.b32.xlu0 %v875, 64
          %v1333 = vpop.permute.xlu0 %1332
          %v1366 = vmul.f32 %v1271, %v1174
          %v1367 = vmul.f32 %v1273, %v1175
          %v1368 = vmul.f32 %v1275, %v1176
          %v1369 = vmul.f32 %v1277, %v1177
          %v1370 = vmul.f32 %v1279, %v1178
          %v1371 = vmul.f32 %v1281, %v1179
          %v1372 = vmul.f32 %v1283, %v1180
          %v1373 = vmul.f32 %v1285, %v1181
          %v1374 = vmul.f32 %v1287, %v1182
          %v1375 = vmul.f32 %v1289, %v1183
          %v1376 = vmul.f32 %v1291, %v1184
          %v1377 = vmul.f32 %v1293, %v1185
          %v1378 = vmul.f32 %v1295, %v1186
          %v1379 = vmul.f32 %v1297, %v1187
          %v1380 = vmul.f32 %v1299, %v1188
          %v1381 = vmul.f32 %v1301, %v1189
          %v1382 = vmul.f32 %v1303, %v1190
          %v1383 = vmul.f32 %v1305, %v1191
          %v1384 = vmul.f32 %v1307, %v1192
          %v1385 = vmul.f32 %v1309, %v1193
          %v1386 = vmul.f32 %v1311, %v1194
          %v1387 = vmul.f32 %v1313, %v1195
          %v1388 = vmul.f32 %v1315, %v1196
          %v1389 = vmul.f32 %v1317, %v1197
          %v1390 = vmul.f32 %v1319, %v1198
          %v1391 = vmul.f32 %v1321, %v1199
          %v1392 = vmul.f32 %v1323, %v1200
          %v1393 = vmul.f32 %v1325, %v1201
          %v1394 = vmul.f32 %v1327, %v1202
          %v1395 = vmul.f32 %v1329, %v1203
          %v1396 = vmul.f32 %v1331, %v1204
          %v1397 = vmul.f32 %v1333, %v1205
          %v1398 = vadd.f32 %v1206, %v1366
          %v1399 = vadd.f32 %v1207, %v1367
          %v1400 = vadd.f32 %v1208, %v1368
          %v1401 = vadd.f32 %v1209, %v1369
          %v1402 = vadd.f32 %v1210, %v1370
          %v1403 = vadd.f32 %v1211, %v1371
          %v1404 = vadd.f32 %v1212, %v1372
          %v1405 = vadd.f32 %v1213, %v1373
          %v1406 = vadd.f32 %v1214, %v1374
          %v1407 = vadd.f32 %v1215, %v1375
          %v1408 = vadd.f32 %v1216, %v1376
          %v1409 = vadd.f32 %v1217, %v1377
          %v1410 = vadd.f32 %v1218, %v1378
          %v1411 = vadd.f32 %v1219, %v1379
          %v1412 = vadd.f32 %v1220, %v1380
          %v1413 = vadd.f32 %v1221, %v1381
          %v1414 = vadd.f32 %v1222, %v1382
          %v1415 = vadd.f32 %v1223, %v1383
          %v1416 = vadd.f32 %v1224, %v1384
          %v1417 = vadd.f32 %v1225, %v1385
          %v1418 = vadd.f32 %v1226, %v1386
          %v1419 = vadd.f32 %v1227, %v1387
          %v1420 = vadd.f32 %v1228, %v1388
          %v1421 = vadd.f32 %v1229, %v1389
          %v1422 = vadd.f32 %v1230, %v1390
          %v1423 = vadd.f32 %v1231, %v1391
          %v1424 = vadd.f32 %v1232, %v1392
          %v1425 = vadd.f32 %v1233, %v1393
          %v1426 = vadd.f32 %v1234, %v1394
          %v1427 = vadd.f32 %v1235, %v1395
          %v1428 = vadd.f32 %v1236, %v1396
          %v1429 = vadd.f32 %v1237, %v1397
          %1430 = vst [vmem:[#allocation2] sm:$0xff] %v1398
          %1431 = vst [vmem:[#allocation2 + $0x8] sm:$0xff] %v1399
          %1432 = vst [vmem:[#allocation2 + $0x10] sm:$0xff] %v1400
          %1433 = vst [vmem:[#allocation2 + $0x18] sm:$0xff] %v1401
          %1434 = vst [vmem:[#allocation2 + $0x20] sm:$0xff] %v1402
          %1435 = vst [vmem:[#allocation2 + $0x28] sm:$0xff] %v1403
          %1436 = vst [vmem:[#allocation2 + $0x30] sm:$0xff] %v1404
          %1437 = vst [vmem:[#allocation2 + $0x38] sm:$0xff] %v1405
          %1438 = vst [vmem:[#allocation2 + $0x40] sm:$0xff] %v1406
          %1439 = vst [vmem:[#allocation2 + $0x48] sm:$0xff] %v1407
          %1440 = vst [vmem:[#allocation2 + $0x50] sm:$0xff] %v1408
          %1441 = vst [vmem:[#allocation2 + $0x58] sm:$0xff] %v1409
          %1442 = vst [vmem:[#allocation2 + $0x60] sm:$0xff] %v1410
          %1443 = vst [vmem:[#allocation2 + $0x68] sm:$0xff] %v1411
          %1444 = vst [vmem:[#allocation2 + $0x70] sm:$0xff] %v1412
          %1445 = vst [vmem:[#allocation2 + $0x78] sm:$0xff] %v1413
          %1446 = vst [vmem:[#allocation2 + $0x80] sm:$0xff] %v1414
          %1447 = vst [vmem:[#allocation2 + $0x88] sm:$0xff] %v1415
          %1448 = vst [vmem:[#allocation2 + $0x90] sm:$0xff] %v1416
          %1449 = vst [vmem:[#allocation2 + $0x98] sm:$0xff] %v1417
          %1450 = vst [vmem:[#allocation2 + $0xa0] sm:$0xff] %v1418
          %1451 = vst [vmem:[#allocation2 + $0xa8] sm:$0xff] %v1419
          %1452 = vst [vmem:[#allocation2 + $0xb0] sm:$0xff] %v1420
          %1453 = vst [vmem:[#allocation2 + $0xb8] sm:$0xff] %v1421
          %1454 = vst [vmem:[#allocation2 + $0xc0] sm:$0xff] %v1422
          %1455 = vst [vmem:[#allocation2 + $0xc8] sm:$0xff] %v1423
          %1456 = vst [vmem:[#allocation2 + $0xd0] sm:$0xff] %v1424
          %1457 = vst [vmem:[#allocation2 + $0xd8] sm:$0xff] %v1425
          %1458 = vst [vmem:[#allocation2 + $0xe0] sm:$0xff] %v1426
          %1459 = vst [vmem:[#allocation2 + $0xe8] sm:$0xff] %v1427
          %1460 = vst [vmem:[#allocation2 + $0xf0] sm:$0xff] %v1428
          %1461 = vst [vmem:[#allocation2 + $0xf8] sm:$0xff] %v1429
          %1462 = vst [vmem:[#allocation3] sm:$0xff] %v984
          %1463 = vst [vmem:[#allocation3 + $0x8] sm:$0xff] %v989
          %1464 = vst [vmem:[#allocation3 + $0x10] sm:$0xff] %v994
          %1465 = vst [vmem:[#allocation3 + $0x18] sm:$0xff] %v999
          %1466 = vst [vmem:[#allocation3 + $0x20] sm:$0xff] %v1004
          %1467 = vst [vmem:[#allocation3 + $0x28] sm:$0xff] %v1009
          %1468 = vst [vmem:[#allocation3 + $0x30] sm:$0xff] %v1014
          %1469 = vst [vmem:[#allocation3 + $0x38] sm:$0xff] %v1019
          %1470 = vst [vmem:[#allocation3 + $0x40] sm:$0xff] %v1024
          %1471 = vst [vmem:[#allocation3 + $0x48] sm:$0xff] %v1029
          %1472 = vst [vmem:[#allocation3 + $0x50] sm:$0xff] %v1034
          %1473 = vst [vmem:[#allocation3 + $0x58] sm:$0xff] %v1039
          %1474 = vst [vmem:[#allocation3 + $0x60] sm:$0xff] %v1044
          %1475 = vst [vmem:[#allocation3 + $0x68] sm:$0xff] %v1049
          %1476 = vst [vmem:[#allocation3 + $0x70] sm:$0xff] %v1054
          %1477 = vst [vmem:[#allocation3 + $0x78] sm:$0xff] %v1059
          %1478 = vst [vmem:[#allocation3 + $0x80] sm:$0xff] %v1064
          %1479 = vst [vmem:[#allocation3 + $0x88] sm:$0xff] %v1069
          %1480 = vst [vmem:[#allocation3 + $0x90] sm:$0xff] %v1074
          %1481 = vst [vmem:[#allocation3 + $0x98] sm:$0xff] %v1079
          %1482 = vst [vmem:[#allocation3 + $0xa0] sm:$0xff] %v1084
          %1483 = vst [vmem:[#allocation3 + $0xa8] sm:$0xff] %v1089
          %1484 = vst [vmem:[#allocation3 + $0xb0] sm:$0xff] %v1094
          %1485 = vst [vmem:[#allocation3 + $0xb8] sm:$0xff] %v1099
          %1486 = vst [vmem:[#allocation3 + $0xc0] sm:$0xff] %v1104
          %1487 = vst [vmem:[#allocation3 + $0xc8] sm:$0xff] %v1109
          %1488 = vst [vmem:[#allocation3 + $0xd0] sm:$0xff] %v1114
          %1489 = vst [vmem:[#allocation3 + $0xd8] sm:$0xff] %v1119
          %1490 = vst [vmem:[#allocation3 + $0xe0] sm:$0xff] %v1124
          %1491 = vst [vmem:[#allocation3 + $0xe8] sm:$0xff] %v1129
          %1492 = vst [vmem:[#allocation3 + $0xf0] sm:$0xff] %v1134
          %1493 = vst [vmem:[#allocation3 + $0xf8] sm:$0xff] %v1139
        $region84: #{tpu_custom_call.1} parent=55 // pred_fallthru
          _
        %s1494 = smul.u32 %s38, 128
        %s1495 = sshra.s32 %s1494, 3
        %s1496 = sand.u32 %s1494, 7
        %s1497 = smul.u32 %s1495, 2
        %s1498 = smul.addr %s1497, 8
        %s1499 = scalar_lea.vmem [#allocation4], %s1498
        %v1500 = vld [vmem:[%s1499] sm:$0xff]
        %v1501 = vld [vmem:[%s1499 + $0x8] sm:$0xff]
        %v1502 = vld [vmem:[%s1499 + $0x10] sm:$0xff]
        %v1503 = vld [vmem:[%s1499 + $0x18] sm:$0xff]
        %v1504 = vld [vmem:[%s1499 + $0x20] sm:$0xff]
        %v1505 = vld [vmem:[%s1499 + $0x28] sm:$0xff]
        %v1506 = vld [vmem:[%s1499 + $0x30] sm:$0xff]
        %v1507 = vld [vmem:[%s1499 + $0x38] sm:$0xff]
        %v1508 = vld [vmem:[%s1499 + $0x40] sm:$0xff]
        %v1509 = vld [vmem:[%s1499 + $0x48] sm:$0xff]
        %v1510 = vld [vmem:[%s1499 + $0x50] sm:$0xff]
        %v1511 = vld [vmem:[%s1499 + $0x58] sm:$0xff]
        %v1512 = vld [vmem:[%s1499 + $0x60] sm:$0xff]
        %v1513 = vld [vmem:[%s1499 + $0x68] sm:$0xff]
        %v1514 = vld [vmem:[%s1499 + $0x70] sm:$0xff]
        %v1515 = vld [vmem:[%s1499 + $0x78] sm:$0xff]
        %v1516 = vld [vmem:[%s1499 + $0x80] sm:$0xff]
        %v1517 = vld [vmem:[%s1499 + $0x88] sm:$0xff]
        %v1518 = vld [vmem:[%s1499 + $0x90] sm:$0xff]
        %v1519 = vld [vmem:[%s1499 + $0x98] sm:$0xff]
        %v1520 = vld [vmem:[%s1499 + $0xa0] sm:$0xff]
        %v1521 = vld [vmem:[%s1499 + $0xa8] sm:$0xff]
        %v1522 = vld [vmem:[%s1499 + $0xb0] sm:$0xff]
        %v1523 = vld [vmem:[%s1499 + $0xb8] sm:$0xff]
        %v1524 = vld [vmem:[%s1499 + $0xc0] sm:$0xff]
        %v1525 = vld [vmem:[%s1499 + $0xc8] sm:$0xff]
        %v1526 = vld [vmem:[%s1499 + $0xd0] sm:$0xff]
        %v1527 = vld [vmem:[%s1499 + $0xd8] sm:$0xff]
        %v1528 = vld [vmem:[%s1499 + $0xe0] sm:$0xff]
        %v1529 = vld [vmem:[%s1499 + $0xe8] sm:$0xff]
        %v1530 = vld [vmem:[%s1499 + $0xf0] sm:$0xff]
        %v1531 = vld [vmem:[%s1499 + $0xf8] sm:$0xff]
        %v1532 = vld [vmem:[%s456] sm:$0xff]
        %v1533 = vld [vmem:[%s456 + $0x8] sm:$0xff]
        %v1534 = vld [vmem:[%s456 + $0x10] sm:$0xff]
        %v1535 = vld [vmem:[%s456 + $0x18] sm:$0xff]
        %v1536 = vld [vmem:[%s456 + $0x20] sm:$0xff]
        %v1537 = vld [vmem:[%s456 + $0x28] sm:$0xff]
        %v1538 = vld [vmem:[%s456 + $0x30] sm:$0xff]
        %v1539 = vld [vmem:[%s456 + $0x38] sm:$0xff]
        %v1540 = vld [vmem:[%s456 + $0x40] sm:$0xff]
        %v1541 = vld [vmem:[%s456 + $0x48] sm:$0xff]
        %v1542 = vld [vmem:[%s456 + $0x50] sm:$0xff]
        %v1543 = vld [vmem:[%s456 + $0x58] sm:$0xff]
        %v1544 = vld [vmem:[%s456 + $0x60] sm:$0xff]
        %v1545 = vld [vmem:[%s456 + $0x68] sm:$0xff]
        %v1546 = vld [vmem:[%s456 + $0x70] sm:$0xff]
        %v1547 = vld [vmem:[%s456 + $0x78] sm:$0xff]
        %v1548 = vld [vmem:[%s456 + $0x80] sm:$0xff]
        %v1549 = vld [vmem:[%s456 + $0x88] sm:$0xff]
        %v1550 = vld [vmem:[%s456 + $0x90] sm:$0xff]
        %v1551 = vld [vmem:[%s456 + $0x98] sm:$0xff]
        %v1552 = vld [vmem:[%s456 + $0xa0] sm:$0xff]
        %v1553 = vld [vmem:[%s456 + $0xa8] sm:$0xff]
        %v1554 = vld [vmem:[%s456 + $0xb0] sm:$0xff]
        %v1555 = vld [vmem:[%s456 + $0xb8] sm:$0xff]
        %v1556 = vld [vmem:[%s456 + $0xc0] sm:$0xff]
        %v1557 = vld [vmem:[%s456 + $0xc8] sm:$0xff]
        %v1558 = vld [vmem:[%s456 + $0xd0] sm:$0xff]
        %v1559 = vld [vmem:[%s456 + $0xd8] sm:$0xff]
        %v1560 = vld [vmem:[%s456 + $0xe0] sm:$0xff]
        %v1561 = vld [vmem:[%s456 + $0xe8] sm:$0xff]
        %v1562 = vld [vmem:[%s456 + $0xf0] sm:$0xff]
        %v1563 = vld [vmem:[%s456 + $0xf8] sm:$0xff]
        %v1564 = vld [vmem:[%s538] sm:$0x1]
        %v1566 = vlaneseq
        %v1567 = vshrl.u32 %v1566, 7
        %v1568 = vsub.s32 0, %v1567
        %v1569 = vrot.slane %v1564, %v1568
        %1571 = vmatprep.subr.mxu0 0.0
        %1572 = vmatpush1.msra.mxu0 %v1532
        %1573 = vmatprep.subr.mxu0 0.0
        %1574 = vmatpush1.msra.mxu0 %v1533
        %1575 = vmatprep.subr.mxu0 0.0
        %1576 = vmatpush1.msra.mxu0 %v1534
        %1577 = vmatprep.subr.mxu0 0.0
        %1578 = vmatpush1.msra.mxu0 %v1535
        %1579 = vmatprep.subr.mxu0 0.0
        %1580 = vmatpush1.msra.mxu0 %v1536
        %1581 = vmatprep.subr.mxu0 0.0
        %1582 = vmatpush1.msra.mxu0 %v1537
        %1583 = vmatprep.subr.mxu0 0.0
        %1584 = vmatpush1.msra.mxu0 %v1538
        %1585 = vmatprep.subr.mxu0 0.0
        %1586 = vmatpush1.msra.mxu0 %v1539
        %1587 = vmatprep.subr.mxu0 0.0
        %1588 = vmatpush1.msra.mxu0 %v1540
        %1589 = vmatprep.subr.mxu0 0.0
        %1590 = vmatpush1.msra.mxu0 %v1541
        %1591 = vmatprep.subr.mxu0 0.0
        %1592 = vmatpush1.msra.mxu0 %v1542
        %1593 = vmatprep.subr.mxu0 0.0
        %1594 = vmatpush1.msra.mxu0 %v1543
        %1595 = vmatprep.subr.mxu0 0.0
        %1596 = vmatpush1.msra.mxu0 %v1544
        %1597 = vmatprep.subr.mxu0 0.0
        %1598 = vmatpush1.msra.mxu0 %v1545
        %1599 = vmatprep.subr.mxu0 0.0
        %1600 = vmatpush1.msra.mxu0 %v1546
        %1601 = vmatprep.subr.mxu0 0.0
        %1602 = vmatpush1.msra.mxu0 %v1547
        %1603 = vmatprep.subr.mxu0 0.0
        %1604 = vmatpush1.msra.mxu0 %v1548
        %1605 = vmatprep.subr.mxu0 0.0
        %1606 = vmatpush1.msra.mxu0 %v1549
        %1607 = vmatprep.subr.mxu0 0.0
        %1608 = vmatpush1.msra.mxu0 %v1550
        %1609 = vmatprep.subr.mxu0 0.0
        %1610 = vmatpush1.msra.mxu0 %v1551
        %1611 = vmatprep.subr.mxu0 0.0
        %1612 = vmatpush1.msra.mxu0 %v1552
        %1613 = vmatprep.subr.mxu0 0.0
        %1614 = vmatpush1.msra.mxu0 %v1553
        %1615 = vmatprep.subr.mxu0 0.0
        %1616 = vmatpush1.msra.mxu0 %v1554
        %1617 = vmatprep.subr.mxu0 0.0
        %1618 = vmatpush1.msra.mxu0 %v1555
        %1619 = vmatprep.subr.mxu0 0.0
        %1620 = vmatpush1.msra.mxu0 %v1556
        %1621 = vmatprep.subr.mxu0 0.0
        %1622 = vmatpush1.msra.mxu0 %v1557
        %1623 = vmatprep.subr.mxu0 0.0
        %1624 = vmatpush1.msra.mxu0 %v1558
        %1625 = vmatprep.subr.mxu0 0.0
        %1626 = vmatpush1.msra.mxu0 %v1559
        %1627 = vmatprep.subr.mxu0 0.0
        %1628 = vmatpush1.msra.mxu0 %v1560
        %1629 = vmatprep.subr.mxu0 0.0
        %1630 = vmatpush1.msra.mxu0 %v1561
        %1631 = vmatprep.subr.mxu0 0.0
        %1632 = vmatpush1.msra.mxu0 %v1562
        %1633 = vmatprep.subr.mxu0 0.0
        %1634 = vmatpush1.msra.mxu0 %v1563
        %1635 = vmatprep.mubr.f32.mxu0 %v1501
        %1636 = vmatmul.mubr.f32.gmra.mrb[0].mxu0 %v1500
        %v1637 = vpop.f32.mrb[0].mxu0
        %v1638 = vadd.f32 %v1569, %v1637
        %v1639 = vpop.f32.mrb[0].mxu0
        %1640 = vmatprep.mubr.f32.mxu0 %v1503
        %1641 = vmatmul.mubr.f32.gmra.mrb[0].mxu0 %v1502
        %v1642 = vpop.f32.mrb[0].mxu0
        %v1643 = vadd.f32 %v1569, %v1642
        %v1644 = vpop.f32.mrb[0].mxu0
        %1645 = vmatprep.mubr.f32.mxu0 %v1505
        %1646 = vmatmul.mubr.f32.gmra.mrb[0].mxu0 %v1504
        %v1647 = vpop.f32.mrb[0].mxu0
        %v1648 = vadd.f32 %v1569, %v1647
        %v1649 = vpop.f32.mrb[0].mxu0
        %1650 = vmatprep.mubr.f32.mxu0 %v1507
        %1651 = vmatmul.mubr.f32.gmra.mrb[0].mxu0 %v1506
        %v1652 = vpop.f32.mrb[0].mxu0
        %v1653 = vadd.f32 %v1569, %v1652
        %v1654 = vpop.f32.mrb[0].mxu0
        %1655 = vmatprep.mubr.f32.mxu0 %v1509
        %1656 = vmatmul.mubr.f32.gmra.mrb[0].mxu0 %v1508
        %v1657 = vpop.f32.mrb[0].mxu0
        %v1658 = vadd.f32 %v1569, %v1657
        %v1659 = vpop.f32.mrb[0].mxu0
        %1660 = vmatprep.mubr.f32.mxu0 %v1511
        %1661 = vmatmul.mubr.f32.gmra.mrb[0].mxu0 %v1510
        %v1662 = vpop.f32.mrb[0].mxu0
        %v1663 = vadd.f32 %v1569, %v1662
        %v1664 = vpop.f32.mrb[0].mxu0
        %1665 = vmatprep.mubr.f32.mxu0 %v1513
        %1666 = vmatmul.mubr.f32.gmra.mrb[0].mxu0 %v1512
        %v1667 = vpop.f32.mrb[0].mxu0
        %v1668 = vadd.f32 %v1569, %v1667
        %v1669 = vpop.f32.mrb[0].mxu0
        %1670 = vmatprep.mubr.f32.mxu0 %v1515
        %1671 = vmatmul.mubr.f32.gmra.mrb[0].mxu0 %v1514
        %v1672 = vpop.f32.mrb[0].mxu0
        %v1673 = vadd.f32 %v1569, %v1672
        %v1674 = vpop.f32.mrb[0].mxu0
        %1675 = vmatprep.mubr.f32.mxu0 %v1517
        %1676 = vmatmul.mubr.f32.gmra.mrb[0].mxu0 %v1516
        %v1677 = vpop.f32.mrb[0].mxu0
        %v1678 = vadd.f32 %v1569, %v1677
        %v1679 = vpop.f32.mrb[0].mxu0
        %1680 = vmatprep.mubr.f32.mxu0 %v1519
        %1681 = vmatmul.mubr.f32.gmra.mrb[0].mxu0 %v1518
        %v1682 = vpop.f32.mrb[0].mxu0
        %v1683 = vadd.f32 %v1569, %v1682
        %v1684 = vpop.f32.mrb[0].mxu0
        %1685 = vmatprep.mubr.f32.mxu0 %v1521
        %1686 = vmatmul.mubr.f32.gmra.mrb[0].mxu0 %v1520
        %v1687 = vpop.f32.mrb[0].mxu0
        %v1688 = vadd.f32 %v1569, %v1687
        %v1689 = vpop.f32.mrb[0].mxu0
        %1690 = vmatprep.mubr.f32.mxu0 %v1523
        %1691 = vmatmul.mubr.f32.gmra.mrb[0].mxu0 %v1522
        %v1692 = vpop.f32.mrb[0].mxu0
        %v1693 = vadd.f32 %v1569, %v1692
        %v1694 = vpop.f32.mrb[0].mxu0
        %1695 = vmatprep.mubr.f32.mxu0 %v1525
        %1696 = vmatmul.mubr.f32.gmra.mrb[0].mxu0 %v1524
        %v1697 = vpop.f32.mrb[0].mxu0
        %v1698 = vadd.f32 %v1569, %v1697
        %v1699 = vpop.f32.mrb[0].mxu0
        %1700 = vmatprep.mubr.f32.mxu0 %v1527
        %1701 = vmatmul.mubr.f32.gmra.mrb[0].mxu0 %v1526
        %v1702 = vpop.f32.mrb[0].mxu0
        %v1703 = vadd.f32 %v1569, %v1702
        %v1704 = vpop.f32.mrb[0].mxu0
        %1705 = vmatprep.mubr.f32.mxu0 %v1529
        %1706 = vmatmul.mubr.f32.gmra.mrb[0].mxu0 %v1528
        %v1707 = vpop.f32.mrb[0].mxu0
        %v1708 = vadd.f32 %v1569, %v1707
        %v1709 = vpop.f32.mrb[0].mxu0
        %1710 = vmatprep.mubr.f32.mxu0 %v1531
        %1711 = vmatmul.mubr.f32.gmra.mrb[0].mxu0 %v1530
        %v1712 = vpop.f32.mrb[0].mxu0
        %v1713 = vadd.f32 %v1569, %v1712
        %v1714 = vpop.f32.mrb[0].mxu0
        %1715 = vdwg.mxu0
        %s1716 = scalar_lea.vmem [#allocation12], %s1494
        %v1717 = vld [vmem:[%s1716] sm:$0xff]
        %v1718 = vld [vmem:[%s1716 + $0x8] sm:$0xff]
        %v1719 = vld [vmem:[%s1716 + $0x10] sm:$0xff]
        %v1720 = vld [vmem:[%s1716 + $0x18] sm:$0xff]
        %v1721 = vld [vmem:[%s1716 + $0x20] sm:$0xff]
        %v1722 = vld [vmem:[%s1716 + $0x28] sm:$0xff]
        %v1723 = vld [vmem:[%s1716 + $0x30] sm:$0xff]
        %v1724 = vld [vmem:[%s1716 + $0x38] sm:$0xff]
        %v1725 = vld [vmem:[%s1716 + $0x40] sm:$0xff]
        %v1726 = vld [vmem:[%s1716 + $0x48] sm:$0xff]
        %v1727 = vld [vmem:[%s1716 + $0x50] sm:$0xff]
        %v1728 = vld [vmem:[%s1716 + $0x58] sm:$0xff]
        %v1729 = vld [vmem:[%s1716 + $0x60] sm:$0xff]
        %v1730 = vld [vmem:[%s1716 + $0x68] sm:$0xff]
        %v1731 = vld [vmem:[%s1716 + $0x70] sm:$0xff]
        %v1732 = vld [vmem:[%s1716 + $0x78] sm:$0xff]
        %s1733 = scalar_lea.vmem [#allocation13], %s1494
        %v1734 = vld [vmem:[%s1733] sm:$0xff]
        %v1735 = vld [vmem:[%s1733 + $0x8] sm:$0xff]
        %v1736 = vld [vmem:[%s1733 + $0x10] sm:$0xff]
        %v1737 = vld [vmem:[%s1733 + $0x18] sm:$0xff]
        %v1738 = vld [vmem:[%s1733 + $0x20] sm:$0xff]
        %v1739 = vld [vmem:[%s1733 + $0x28] sm:$0xff]
        %v1740 = vld [vmem:[%s1733 + $0x30] sm:$0xff]
        %v1741 = vld [vmem:[%s1733 + $0x38] sm:$0xff]
        %v1742 = vld [vmem:[%s1733 + $0x40] sm:$0xff]
        %v1743 = vld [vmem:[%s1733 + $0x48] sm:$0xff]
        %v1744 = vld [vmem:[%s1733 + $0x50] sm:$0xff]
        %v1745 = vld [vmem:[%s1733 + $0x58] sm:$0xff]
        %v1746 = vld [vmem:[%s1733 + $0x60] sm:$0xff]
        %v1747 = vld [vmem:[%s1733 + $0x68] sm:$0xff]
        %v1748 = vld [vmem:[%s1733 + $0x70] sm:$0xff]
        %v1749 = vld [vmem:[%s1733 + $0x78] sm:$0xff]
        %v1750 = vmul.f32 %v1638, %v1717
        %v1751 = vmul.f32 %v1643, %v1718
        %v1752 = vmul.f32 %v1648, %v1719
        %v1753 = vmul.f32 %v1653, %v1720
        %v1754 = vmul.f32 %v1658, %v1721
        %v1755 = vmul.f32 %v1663, %v1722
        %v1756 = vmul.f32 %v1668, %v1723
        %v1757 = vmul.f32 %v1673, %v1724
        %v1758 = vmul.f32 %v1678, %v1725
        %v1759 = vmul.f32 %v1683, %v1726
        %v1760 = vmul.f32 %v1688, %v1727
        %v1761 = vmul.f32 %v1693, %v1728
        %v1762 = vmul.f32 %v1698, %v1729
        %v1763 = vmul.f32 %v1703, %v1730
        %v1764 = vmul.f32 %v1708, %v1731
        %v1765 = vmul.f32 %v1713, %v1732
        %1782 = vrot.lane.b32.xlu0 %v1638, 64
        %v1783 = vpop.permute.xlu0 %1782
        %1784 = vrot.lane.b32.xlu0 %v1643, 64
        %v1785 = vpop.permute.xlu0 %1784
        %1786 = vrot.lane.b32.xlu0 %v1648, 64
        %v1787 = vpop.permute.xlu0 %1786
        %1788 = vrot.lane.b32.xlu0 %v1653, 64
        %v1789 = vpop.permute.xlu0 %1788
        %1790 = vrot.lane.b32.xlu0 %v1658, 64
        %v1791 = vpop.permute.xlu0 %1790
        %1792 = vrot.lane.b32.xlu0 %v1663, 64
        %v1793 = vpop.permute.xlu0 %1792
        %1794 = vrot.lane.b32.xlu0 %v1668, 64
        %v1795 = vpop.permute.xlu0 %1794
        %1796 = vrot.lane.b32.xlu0 %v1673, 64
        %v1797 = vpop.permute.xlu0 %1796
        %1798 = vrot.lane.b32.xlu0 %v1678, 64
        %v1799 = vpop.permute.xlu0 %1798
        %1800 = vrot.lane.b32.xlu0 %v1683, 64
        %v1801 = vpop.permute.xlu0 %1800
        %1802 = vrot.lane.b32.xlu0 %v1688, 64
        %v1803 = vpop.permute.xlu0 %1802
        %1804 = vrot.lane.b32.xlu0 %v1693, 64
        %v1805 = vpop.permute.xlu0 %1804
        %1806 = vrot.lane.b32.xlu0 %v1698, 64
        %v1807 = vpop.permute.xlu0 %1806
        %1808 = vrot.lane.b32.xlu0 %v1703, 64
        %v1809 = vpop.permute.xlu0 %1808
        %1810 = vrot.lane.b32.xlu0 %v1708, 64
        %v1811 = vpop.permute.xlu0 %1810
        %1812 = vrot.lane.b32.xlu0 %v1713, 64
        %v1813 = vpop.permute.xlu0 %1812
        %v1830 = vmul.f32 %v1783, %v1734
        %v1831 = vmul.f32 %v1785, %v1735
        %v1832 = vmul.f32 %v1787, %v1736
        %v1833 = vmul.f32 %v1789, %v1737
        %v1834 = vmul.f32 %v1791, %v1738
        %v1835 = vmul.f32 %v1793, %v1739
        %v1836 = vmul.f32 %v1795, %v1740
        %v1837 = vmul.f32 %v1797, %v1741
        %v1838 = vmul.f32 %v1799, %v1742
        %v1839 = vmul.f32 %v1801, %v1743
        %v1840 = vmul.f32 %v1803, %v1744
        %v1841 = vmul.f32 %v1805, %v1745
        %v1842 = vmul.f32 %v1807, %v1746
        %v1843 = vmul.f32 %v1809, %v1747
        %v1844 = vmul.f32 %v1811, %v1748
        %v1845 = vmul.f32 %v1813, %v1749
        %v1846 = vadd.f32 %v1750, %v1830
        %v1847 = vadd.f32 %v1751, %v1831
        %v1848 = vadd.f32 %v1752, %v1832
        %v1849 = vadd.f32 %v1753, %v1833
        %v1850 = vadd.f32 %v1754, %v1834
        %v1851 = vadd.f32 %v1755, %v1835
        %v1852 = vadd.f32 %v1756, %v1836
        %v1853 = vadd.f32 %v1757, %v1837
        %v1854 = vadd.f32 %v1758, %v1838
        %v1855 = vadd.f32 %v1759, %v1839
        %v1856 = vadd.f32 %v1760, %v1840
        %v1857 = vadd.f32 %v1761, %v1841
        %v1858 = vadd.f32 %v1762, %v1842
        %v1859 = vadd.f32 %v1763, %v1843
        %v1860 = vadd.f32 %v1764, %v1844
        %v1861 = vadd.f32 %v1765, %v1845
        %v1862 = vld [vmem:[#allocation2] sm:$0xff]
        %v1863 = vld [vmem:[#allocation2 + $0x8] sm:$0xff]
        %v1864 = vld [vmem:[#allocation2 + $0x10] sm:$0xff]
        %v1865 = vld [vmem:[#allocation2 + $0x18] sm:$0xff]
        %v1866 = vld [vmem:[#allocation2 + $0x20] sm:$0xff]
        %v1867 = vld [vmem:[#allocation2 + $0x28] sm:$0xff]
        %v1868 = vld [vmem:[#allocation2 + $0x30] sm:$0xff]
        %v1869 = vld [vmem:[#allocation2 + $0x38] sm:$0xff]
        %v1870 = vld [vmem:[#allocation2 + $0x40] sm:$0xff]
        %v1871 = vld [vmem:[#allocation2 + $0x48] sm:$0xff]
        %v1872 = vld [vmem:[#allocation2 + $0x50] sm:$0xff]
        %v1873 = vld [vmem:[#allocation2 + $0x58] sm:$0xff]
        %v1874 = vld [vmem:[#allocation2 + $0x60] sm:$0xff]
        %v1875 = vld [vmem:[#allocation2 + $0x68] sm:$0xff]
        %v1876 = vld [vmem:[#allocation2 + $0x70] sm:$0xff]
        %v1877 = vld [vmem:[#allocation2 + $0x78] sm:$0xff]
        %v1878 = vld [vmem:[#allocation2 + $0x80] sm:$0xff]
        %v1879 = vld [vmem:[#allocation2 + $0x88] sm:$0xff]
        %v1880 = vld [vmem:[#allocation2 + $0x90] sm:$0xff]
        %v1881 = vld [vmem:[#allocation2 + $0x98] sm:$0xff]
        %v1882 = vld [vmem:[#allocation2 + $0xa0] sm:$0xff]
        %v1883 = vld [vmem:[#allocation2 + $0xa8] sm:$0xff]
        %v1884 = vld [vmem:[#allocation2 + $0xb0] sm:$0xff]
        %v1885 = vld [vmem:[#allocation2 + $0xb8] sm:$0xff]
        %v1886 = vld [vmem:[#allocation2 + $0xc0] sm:$0xff]
        %v1887 = vld [vmem:[#allocation2 + $0xc8] sm:$0xff]
        %v1888 = vld [vmem:[#allocation2 + $0xd0] sm:$0xff]
        %v1889 = vld [vmem:[#allocation2 + $0xd8] sm:$0xff]
        %v1890 = vld [vmem:[#allocation2 + $0xe0] sm:$0xff]
        %v1891 = vld [vmem:[#allocation2 + $0xe8] sm:$0xff]
        %v1892 = vld [vmem:[#allocation2 + $0xf0] sm:$0xff]
        %v1893 = vld [vmem:[#allocation2 + $0xf8] sm:$0xff]
        %1894 = vmatprep.subr.mxu0 0.0
        %1895 = vmatpush1.xpose.msra.mxu0 %v1862
        %1896 = vmatprep.subr.mxu0 0.0
        %1897 = vmatpush1.xpose.msra.mxu0 %v1863
        %1898 = vmatprep.subr.mxu0 0.0
        %1899 = vmatpush1.xpose.msra.mxu0 %v1864
        %1900 = vmatprep.subr.mxu0 0.0
        %1901 = vmatpush1.xpose.msra.mxu0 %v1865
        %1902 = vmatprep.subr.mxu0 0.0
        %1903 = vmatpush1.xpose.msra.mxu0 %v1866
        %1904 = vmatprep.subr.mxu0 0.0
        %1905 = vmatpush1.xpose.msra.mxu0 %v1867
        %1906 = vmatprep.subr.mxu0 0.0
        %1907 = vmatpush1.xpose.msra.mxu0 %v1868
        %1908 = vmatprep.subr.mxu0 0.0
        %1909 = vmatpush1.xpose.msra.mxu0 %v1869
        %1910 = vmatprep.subr.mxu0 0.0
        %1911 = vmatpush1.xpose.msra.mxu0 %v1870
        %1912 = vmatprep.subr.mxu0 0.0
        %1913 = vmatpush1.xpose.msra.mxu0 %v1871
        %1914 = vmatprep.subr.mxu0 0.0
        %1915 = vmatpush1.xpose.msra.mxu0 %v1872
        %1916 = vmatprep.subr.mxu0 0.0
        %1917 = vmatpush1.xpose.msra.mxu0 %v1873
        %1918 = vmatprep.subr.mxu0 0.0
        %1919 = vmatpush1.xpose.msra.mxu0 %v1874
        %1920 = vmatprep.subr.mxu0 0.0
        %1921 = vmatpush1.xpose.msra.mxu0 %v1875
        %1922 = vmatprep.subr.mxu0 0.0
        %1923 = vmatpush1.xpose.msra.mxu0 %v1876
        %1924 = vmatprep.subr.mxu0 0.0
        %1925 = vmatpush1.xpose.msra.mxu0 %v1877
        %1926 = vmatprep.subr.mxu0 0.0
        %1927 = vmatpush1.xpose.msra.mxu0 %v1878
        %1928 = vmatprep.subr.mxu0 0.0
        %1929 = vmatpush1.xpose.msra.mxu0 %v1879
        %1930 = vmatprep.subr.mxu0 0.0
        %1931 = vmatpush1.xpose.msra.mxu0 %v1880
        %1932 = vmatprep.subr.mxu0 0.0
        %1933 = vmatpush1.xpose.msra.mxu0 %v1881
        %1934 = vmatprep.subr.mxu0 0.0
        %1935 = vmatpush1.xpose.msra.mxu0 %v1882
        %1936 = vmatprep.subr.mxu0 0.0
        %1937 = vmatpush1.xpose.msra.mxu0 %v1883
        %1938 = vmatprep.subr.mxu0 0.0
        %1939 = vmatpush1.xpose.msra.mxu0 %v1884
        %1940 = vmatprep.subr.mxu0 0.0
        %1941 = vmatpush1.xpose.msra.mxu0 %v1885
        %1942 = vmatprep.subr.mxu0 0.0
        %1943 = vmatpush1.xpose.msra.mxu0 %v1886
        %1944 = vmatprep.subr.mxu0 0.0
        %1945 = vmatpush1.xpose.msra.mxu0 %v1887
        %1946 = vmatprep.subr.mxu0 0.0
        %1947 = vmatpush1.xpose.msra.mxu0 %v1888
        %1948 = vmatprep.subr.mxu0 0.0
        %1949 = vmatpush1.xpose.msra.mxu0 %v1889
        %1950 = vmatprep.subr.mxu0 0.0
        %1951 = vmatpush1.xpose.msra.mxu0 %v1890
        %1952 = vmatprep.subr.mxu0 0.0
        %1953 = vmatpush1.xpose.msra.mxu0 %v1891
        %1954 = vmatprep.subr.mxu0 0.0
        %1955 = vmatpush1.xpose.msra.mxu0 %v1892
        %1956 = vmatprep.subr.mxu0 0.0
        %1957 = vmatpush1.xpose.msra.mxu0 %v1893
        %1958 = vmatprep.mubr.f32.mxu0 0.0
        %1959 = vmatmul.mubr.f32.gmra.mrb[0].mxu0 %v1846
        %v1960 = vpop.f32.mrb[0].mxu0
        %v1961 = vadd.f32 0.0, %v1960
        %v1962 = vpop.f32.mrb[0].mxu0
        %v1963 = vadd.f32 0.0, %v1962
        %1964 = vmatprep.mubr.f32.mxu0 0.0
        %1965 = vmatmul.mubr.f32.gmra.mrb[0].mxu0 %v1847
        %v1966 = vpop.f32.mrb[0].mxu0
        %v1967 = vadd.f32 0.0, %v1966
        %v1968 = vpop.f32.mrb[0].mxu0
        %v1969 = vadd.f32 0.0, %v1968
        %1970 = vmatprep.mubr.f32.mxu0 0.0
        %1971 = vmatmul.mubr.f32.gmra.mrb[0].mxu0 %v1848
        %v1972 = vpop.f32.mrb[0].mxu0
        %v1973 = vadd.f32 0.0, %v1972
        %v1974 = vpop.f32.mrb[0].mxu0
        %v1975 = vadd.f32 0.0, %v1974
        %1976 = vmatprep.mubr.f32.mxu0 0.0
        %1977 = vmatmul.mubr.f32.gmra.mrb[0].mxu0 %v1849
        %v1978 = vpop.f32.mrb[0].mxu0
        %v1979 = vadd.f32 0.0, %v1978
        %v1980 = vpop.f32.mrb[0].mxu0
        %v1981 = vadd.f32 0.0, %v1980
        %1982 = vmatprep.mubr.f32.mxu0 0.0
        %1983 = vmatmul.mubr.f32.gmra.mrb[0].mxu0 %v1850
        %v1984 = vpop.f32.mrb[0].mxu0
        %v1985 = vadd.f32 0.0, %v1984
        %v1986 = vpop.f32.mrb[0].mxu0
        %v1987 = vadd.f32 0.0, %v1986
        %1988 = vmatprep.mubr.f32.mxu0 0.0
        %1989 = vmatmul.mubr.f32.gmra.mrb[0].mxu0 %v1851
        %v1990 = vpop.f32.mrb[0].mxu0
        %v1991 = vadd.f32 0.0, %v1990
        %v1992 = vpop.f32.mrb[0].mxu0
        %v1993 = vadd.f32 0.0, %v1992
        %1994 = vmatprep.mubr.f32.mxu0 0.0
        %1995 = vmatmul.mubr.f32.gmra.mrb[0].mxu0 %v1852
        %v1996 = vpop.f32.mrb[0].mxu0
        %v1997 = vadd.f32 0.0, %v1996
        %v1998 = vpop.f32.mrb[0].mxu0
        %v1999 = vadd.f32 0.0, %v1998
        %2000 = vmatprep.mubr.f32.mxu0 0.0
        %2001 = vmatmul.mubr.f32.gmra.mrb[0].mxu0 %v1853
        %v2002 = vpop.f32.mrb[0].mxu0
        %v2003 = vadd.f32 0.0, %v2002
        %v2004 = vpop.f32.mrb[0].mxu0
        %v2005 = vadd.f32 0.0, %v2004
        %2006 = vmatprep.mubr.f32.mxu0 0.0
        %2007 = vmatmul.mubr.f32.gmra.mrb[0].mxu0 %v1854
        %v2008 = vpop.f32.mrb[0].mxu0
        %v2009 = vadd.f32 0.0, %v2008
        %v2010 = vpop.f32.mrb[0].mxu0
        %v2011 = vadd.f32 0.0, %v2010
        %2012 = vmatprep.mubr.f32.mxu0 0.0
        %2013 = vmatmul.mubr.f32.gmra.mrb[0].mxu0 %v1855
        %v2014 = vpop.f32.mrb[0].mxu0
        %v2015 = vadd.f32 0.0, %v2014
        %v2016 = vpop.f32.mrb[0].mxu0
        %v2017 = vadd.f32 0.0, %v2016
        %2018 = vmatprep.mubr.f32.mxu0 0.0
        %2019 = vmatmul.mubr.f32.gmra.mrb[0].mxu0 %v1856
        %v2020 = vpop.f32.mrb[0].mxu0
        %v2021 = vadd.f32 0.0, %v2020
        %v2022 = vpop.f32.mrb[0].mxu0
        %v2023 = vadd.f32 0.0, %v2022
        %2024 = vmatprep.mubr.f32.mxu0 0.0
        %2025 = vmatmul.mubr.f32.gmra.mrb[0].mxu0 %v1857
        %v2026 = vpop.f32.mrb[0].mxu0
        %v2027 = vadd.f32 0.0, %v2026
        %v2028 = vpop.f32.mrb[0].mxu0
        %v2029 = vadd.f32 0.0, %v2028
        %2030 = vmatprep.mubr.f32.mxu0 0.0
        %2031 = vmatmul.mubr.f32.gmra.mrb[0].mxu0 %v1858
        %v2032 = vpop.f32.mrb[0].mxu0
        %v2033 = vadd.f32 0.0, %v2032
        %v2034 = vpop.f32.mrb[0].mxu0
        %v2035 = vadd.f32 0.0, %v2034
        %2036 = vmatprep.mubr.f32.mxu0 0.0
        %2037 = vmatmul.mubr.f32.gmra.mrb[0].mxu0 %v1859
        %v2038 = vpop.f32.mrb[0].mxu0
        %v2039 = vadd.f32 0.0, %v2038
        %v2040 = vpop.f32.mrb[0].mxu0
        %v2041 = vadd.f32 0.0, %v2040
        %2042 = vmatprep.mubr.f32.mxu0 0.0
        %2043 = vmatmul.mubr.f32.gmra.mrb[0].mxu0 %v1860
        %v2044 = vpop.f32.mrb[0].mxu0
        %v2045 = vadd.f32 0.0, %v2044
        %v2046 = vpop.f32.mrb[0].mxu0
        %v2047 = vadd.f32 0.0, %v2046
        %2048 = vmatprep.mubr.f32.mxu0 0.0
        %2049 = vmatmul.mubr.f32.gmra.mrb[0].mxu0 %v1861
        %v2050 = vpop.f32.mrb[0].mxu0
        %v2051 = vadd.f32 0.0, %v2050
        %v2052 = vpop.f32.mrb[0].mxu0
        %v2053 = vadd.f32 0.0, %v2052
        %2054 = vdwg.mxu0
        %v2055 = vmax.f32 %v1961, %v1963
        %2056 = vmax.xlane.f32.xlu0 %v2055
        %v2057 = vpop.xlane.xlu0 %2056
        %v2058 = vmax.f32 %v1967, %v1969
        %2059 = vmax.xlane.f32.xlu0 %v2058
        %v2060 = vpop.xlane.xlu0 %2059
        %v2061 = vmax.f32 %v1973, %v1975
        %2062 = vmax.xlane.f32.xlu0 %v2061
        %v2063 = vpop.xlane.xlu0 %2062
        %v2064 = vmax.f32 %v1979, %v1981
        %2065 = vmax.xlane.f32.xlu0 %v2064
        %v2066 = vpop.xlane.xlu0 %2065
        %v2067 = vmax.f32 %v1985, %v1987
        %2068 = vmax.xlane.f32.xlu0 %v2067
        %v2069 = vpop.xlane.xlu0 %2068
        %v2070 = vmax.f32 %v1991, %v1993
        %2071 = vmax.xlane.f32.xlu0 %v2070
        %v2072 = vpop.xlane.xlu0 %2071
        %v2073 = vmax.f32 %v1997, %v1999
        %2074 = vmax.xlane.f32.xlu0 %v2073
        %v2075 = vpop.xlane.xlu0 %2074
        %v2076 = vmax.f32 %v2003, %v2005
        %2077 = vmax.xlane.f32.xlu0 %v2076
        %v2078 = vpop.xlane.xlu0 %2077
        %v2079 = vmax.f32 %v2009, %v2011
        %2080 = vmax.xlane.f32.xlu0 %v2079
        %v2081 = vpop.xlane.xlu0 %2080
        %v2082 = vmax.f32 %v2015, %v2017
        %2083 = vmax.xlane.f32.xlu0 %v2082
        %v2084 = vpop.xlane.xlu0 %2083
        %v2085 = vmax.f32 %v2021, %v2023
        %2086 = vmax.xlane.f32.xlu0 %v2085
        %v2087 = vpop.xlane.xlu0 %2086
        %v2088 = vmax.f32 %v2027, %v2029
        %2089 = vmax.xlane.f32.xlu0 %v2088
        %v2090 = vpop.xlane.xlu0 %2089
        %v2091 = vmax.f32 %v2033, %v2035
        %2092 = vmax.xlane.f32.xlu0 %v2091
        %v2093 = vpop.xlane.xlu0 %2092
        %v2094 = vmax.f32 %v2039, %v2041
        %2095 = vmax.xlane.f32.xlu0 %v2094
        %v2096 = vpop.xlane.xlu0 %2095
        %v2097 = vmax.f32 %v2045, %v2047
        %2098 = vmax.xlane.f32.xlu0 %v2097
        %v2099 = vpop.xlane.xlu0 %2098
        %v2100 = vmax.f32 %v2051, %v2053
        %2101 = vmax.xlane.f32.xlu0 %v2100
        %v2102 = vpop.xlane.xlu0 %2101
        %v2103 = vsub.f32 %v1961, %v2057
        %v2104 = vsub.f32 %v1963, %v2057
        %v2105 = vsub.f32 %v1967, %v2060
        %v2106 = vsub.f32 %v1969, %v2060
        %v2107 = vsub.f32 %v1973, %v2063
        %v2108 = vsub.f32 %v1975, %v2063
        %v2109 = vsub.f32 %v1979, %v2066
        %v2110 = vsub.f32 %v1981, %v2066
        %v2111 = vsub.f32 %v1985, %v2069
        %v2112 = vsub.f32 %v1987, %v2069
        %v2113 = vsub.f32 %v1991, %v2072
        %v2114 = vsub.f32 %v1993, %v2072
        %v2115 = vsub.f32 %v1997, %v2075
        %v2116 = vsub.f32 %v1999, %v2075
        %v2117 = vsub.f32 %v2003, %v2078
        %v2118 = vsub.f32 %v2005, %v2078
        %v2119 = vsub.f32 %v2009, %v2081
        %v2120 = vsub.f32 %v2011, %v2081
        %v2121 = vsub.f32 %v2015, %v2084
        %v2122 = vsub.f32 %v2017, %v2084
        %v2123 = vsub.f32 %v2021, %v2087
        %v2124 = vsub.f32 %v2023, %v2087
        %v2125 = vsub.f32 %v2027, %v2090
        %v2126 = vsub.f32 %v2029, %v2090
        %v2127 = vsub.f32 %v2033, %v2093
        %v2128 = vsub.f32 %v2035, %v2093
        %v2129 = vsub.f32 %v2039, %v2096
        %v2130 = vsub.f32 %v2041, %v2096
        %v2131 = vsub.f32 %v2045, %v2099
        %v2132 = vsub.f32 %v2047, %v2099
        %v2133 = vsub.f32 %v2051, %v2102
        %v2134 = vsub.f32 %v2053, %v2102
        %v2135 = vmul.f32 %v2103, 1.442695
        %v2136 = vpow.pop %v2135
        %v2137 = vmul.f32 %v2104, 1.442695
        %v2138 = vpow.pop %v2137
        %v2139 = vmul.f32 %v2105, 1.442695
        %v2140 = vpow.pop %v2139
        %v2141 = vmul.f32 %v2106, 1.442695
        %v2142 = vpow.pop %v2141
        %v2143 = vmul.f32 %v2107, 1.442695
        %v2144 = vpow.pop %v2143
        %v2145 = vmul.f32 %v2108, 1.442695
        %v2146 = vpow.pop %v2145
        %v2147 = vmul.f32 %v2109, 1.442695
        %v2148 = vpow.pop %v2147
        %v2149 = vmul.f32 %v2110, 1.442695
        %v2150 = vpow.pop %v2149
        %v2151 = vmul.f32 %v2111, 1.442695
        %v2152 = vpow.pop %v2151
        %v2153 = vmul.f32 %v2112, 1.442695
        %v2154 = vpow.pop %v2153
        %v2155 = vmul.f32 %v2113, 1.442695
        %v2156 = vpow.pop %v2155
        %v2157 = vmul.f32 %v2114, 1.442695
        %v2158 = vpow.pop %v2157
        %v2159 = vmul.f32 %v2115, 1.442695
        %v2160 = vpow.pop %v2159
        %v2161 = vmul.f32 %v2116, 1.442695
        %v2162 = vpow.pop %v2161
        %v2163 = vmul.f32 %v2117, 1.442695
        %v2164 = vpow.pop %v2163
        %v2165 = vmul.f32 %v2118, 1.442695
        %v2166 = vpow.pop %v2165
        %v2167 = vmul.f32 %v2119, 1.442695
        %v2168 = vpow.pop %v2167
        %v2169 = vmul.f32 %v2120, 1.442695
        %v2170 = vpow.pop %v2169
        %v2171 = vmul.f32 %v2121, 1.442695
        %v2172 = vpow.pop %v2171
        %v2173 = vmul.f32 %v2122, 1.442695
        %v2174 = vpow.pop %v2173
        %v2175 = vmul.f32 %v2123, 1.442695
        %v2176 = vpow.pop %v2175
        %v2177 = vmul.f32 %v2124, 1.442695
        %v2178 = vpow.pop %v2177
        %v2179 = vmul.f32 %v2125, 1.442695
        %v2180 = vpow.pop %v2179
        %v2181 = vmul.f32 %v2126, 1.442695
        %v2182 = vpow.pop %v2181
        %v2183 = vmul.f32 %v2127, 1.442695
        %v2184 = vpow.pop %v2183
        %v2185 = vmul.f32 %v2128, 1.442695
        %v2186 = vpow.pop %v2185
        %v2187 = vmul.f32 %v2129, 1.442695
        %v2188 = vpow.pop %v2187
        %v2189 = vmul.f32 %v2130, 1.442695
        %v2190 = vpow.pop %v2189
        %v2191 = vmul.f32 %v2131, 1.442695
        %v2192 = vpow.pop %v2191
        %v2193 = vmul.f32 %v2132, 1.442695
        %v2194 = vpow.pop %v2193
        %v2195 = vmul.f32 %v2133, 1.442695
        %v2196 = vpow.pop %v2195
        %v2197 = vmul.f32 %v2134, 1.442695
        %v2198 = vpow.pop %v2197
        %v2199 = vadd.f32 %v2136, %v2138
        %2200 = vadd.xlane.f32.xlu0 %v2199
        %v2201 = vpop.xlane.xlu0 %2200
        %v2202 = vadd.f32 %v2140, %v2142
        %2203 = vadd.xlane.f32.xlu0 %v2202
        %v2204 = vpop.xlane.xlu0 %2203
        %v2205 = vadd.f32 %v2144, %v2146
        %2206 = vadd.xlane.f32.xlu0 %v2205
        %v2207 = vpop.xlane.xlu0 %2206
        %v2208 = vadd.f32 %v2148, %v2150
        %2209 = vadd.xlane.f32.xlu0 %v2208
        %v2210 = vpop.xlane.xlu0 %2209
        %v2211 = vadd.f32 %v2152, %v2154
        %2212 = vadd.xlane.f32.xlu0 %v2211
        %v2213 = vpop.xlane.xlu0 %2212
        %v2214 = vadd.f32 %v2156, %v2158
        %2215 = vadd.xlane.f32.xlu0 %v2214
        %v2216 = vpop.xlane.xlu0 %2215
        %v2217 = vadd.f32 %v2160, %v2162
        %2218 = vadd.xlane.f32.xlu0 %v2217
        %v2219 = vpop.xlane.xlu0 %2218
        %v2220 = vadd.f32 %v2164, %v2166
        %2221 = vadd.xlane.f32.xlu0 %v2220
        %v2222 = vpop.xlane.xlu0 %2221
        %v2223 = vadd.f32 %v2168, %v2170
        %2224 = vadd.xlane.f32.xlu0 %v2223
        %v2225 = vpop.xlane.xlu0 %2224
        %v2226 = vadd.f32 %v2172, %v2174
        %2227 = vadd.xlane.f32.xlu0 %v2226
        %v2228 = vpop.xlane.xlu0 %2227
        %v2229 = vadd.f32 %v2176, %v2178
        %2230 = vadd.xlane.f32.xlu0 %v2229
        %v2231 = vpop.xlane.xlu0 %2230
        %v2232 = vadd.f32 %v2180, %v2182
        %2233 = vadd.xlane.f32.xlu0 %v2232
        %v2234 = vpop.xlane.xlu0 %2233
        %v2235 = vadd.f32 %v2184, %v2186
        %2236 = vadd.xlane.f32.xlu0 %v2235
        %v2237 = vpop.xlane.xlu0 %2236
        %v2238 = vadd.f32 %v2188, %v2190
        %2239 = vadd.xlane.f32.xlu0 %v2238
        %v2240 = vpop.xlane.xlu0 %2239
        %v2241 = vadd.f32 %v2192, %v2194
        %2242 = vadd.xlane.f32.xlu0 %v2241
        %v2243 = vpop.xlane.xlu0 %2242
        %v2244 = vadd.f32 %v2196, %v2198
        %2245 = vadd.xlane.f32.xlu0 %v2244
        %v2246 = vpop.xlane.xlu0 %2245
        %v2247 = vrcp.pop %v2201
        %v2248 = vmul.f32 %v2136, %v2247
        %v2249 = vmul.f32 %v2138, %v2247
        %v2250 = vrcp.pop %v2204
        %v2251 = vmul.f32 %v2140, %v2250
        %v2252 = vmul.f32 %v2142, %v2250
        %v2253 = vrcp.pop %v2207
        %v2254 = vmul.f32 %v2144, %v2253
        %v2255 = vmul.f32 %v2146, %v2253
        %v2256 = vrcp.pop %v2210
        %v2257 = vmul.f32 %v2148, %v2256
        %v2258 = vmul.f32 %v2150, %v2256
        %v2259 = vrcp.pop %v2213
        %v2260 = vmul.f32 %v2152, %v2259
        %v2261 = vmul.f32 %v2154, %v2259
        %v2262 = vrcp.pop %v2216
        %v2263 = vmul.f32 %v2156, %v2262
        %v2264 = vmul.f32 %v2158, %v2262
        %v2265 = vrcp.pop %v2219
        %v2266 = vmul.f32 %v2160, %v2265
        %v2267 = vmul.f32 %v2162, %v2265
        %v2268 = vrcp.pop %v2222
        %v2269 = vmul.f32 %v2164, %v2268
        %v2270 = vmul.f32 %v2166, %v2268
        %v2271 = vrcp.pop %v2225
        %v2272 = vmul.f32 %v2168, %v2271
        %v2273 = vmul.f32 %v2170, %v2271
        %v2274 = vrcp.pop %v2228
        %v2275 = vmul.f32 %v2172, %v2274
        %v2276 = vmul.f32 %v2174, %v2274
        %v2277 = vrcp.pop %v2231
        %v2278 = vmul.f32 %v2176, %v2277
        %v2279 = vmul.f32 %v2178, %v2277
        %v2280 = vrcp.pop %v2234
        %v2281 = vmul.f32 %v2180, %v2280
        %v2282 = vmul.f32 %v2182, %v2280
        %v2283 = vrcp.pop %v2237
        %v2284 = vmul.f32 %v2184, %v2283
        %v2285 = vmul.f32 %v2186, %v2283
        %v2286 = vrcp.pop %v2240
        %v2287 = vmul.f32 %v2188, %v2286
        %v2288 = vmul.f32 %v2190, %v2286
        %v2289 = vrcp.pop %v2243
        %v2290 = vmul.f32 %v2192, %v2289
        %v2291 = vmul.f32 %v2194, %v2289
        %v2292 = vrcp.pop %v2246
        %v2293 = vmul.f32 %v2196, %v2292
        %v2294 = vmul.f32 %v2198, %v2292
        %v2295 = vld [vmem:[#allocation3] sm:$0xff]
        %v2296 = vld [vmem:[#allocation3 + $0x8] sm:$0xff]
        %v2297 = vld [vmem:[#allocation3 + $0x10] sm:$0xff]
        %v2298 = vld [vmem:[#allocation3 + $0x18] sm:$0xff]
        %v2299 = vld [vmem:[#allocation3 + $0x20] sm:$0xff]
        %v2300 = vld [vmem:[#allocation3 + $0x28] sm:$0xff]
        %v2301 = vld [vmem:[#allocation3 + $0x30] sm:$0xff]
        %v2302 = vld [vmem:[#allocation3 + $0x38] sm:$0xff]
        %v2303 = vld [vmem:[#allocation3 + $0x40] sm:$0xff]
        %v2304 = vld [vmem:[#allocation3 + $0x48] sm:$0xff]
        %v2305 = vld [vmem:[#allocation3 + $0x50] sm:$0xff]
        %v2306 = vld [vmem:[#allocation3 + $0x58] sm:$0xff]
        %v2307 = vld [vmem:[#allocation3 + $0x60] sm:$0xff]
        %v2308 = vld [vmem:[#allocation3 + $0x68] sm:$0xff]
        %v2309 = vld [vmem:[#allocation3 + $0x70] sm:$0xff]
        %v2310 = vld [vmem:[#allocation3 + $0x78] sm:$0xff]
        %v2311 = vld [vmem:[#allocation3 + $0x80] sm:$0xff]
        %v2312 = vld [vmem:[#allocation3 + $0x88] sm:$0xff]
        %v2313 = vld [vmem:[#allocation3 + $0x90] sm:$0xff]
        %v2314 = vld [vmem:[#allocation3 + $0x98] sm:$0xff]
        %v2315 = vld [vmem:[#allocation3 + $0xa0] sm:$0xff]
        %v2316 = vld [vmem:[#allocation3 + $0xa8] sm:$0xff]
        %v2317 = vld [vmem:[#allocation3 + $0xb0] sm:$0xff]
        %v2318 = vld [vmem:[#allocation3 + $0xb8] sm:$0xff]
        %v2319 = vld [vmem:[#allocation3 + $0xc0] sm:$0xff]
        %v2320 = vld [vmem:[#allocation3 + $0xc8] sm:$0xff]
        %v2321 = vld [vmem:[#allocation3 + $0xd0] sm:$0xff]
        %v2322 = vld [vmem:[#allocation3 + $0xd8] sm:$0xff]
        %v2323 = vld [vmem:[#allocation3 + $0xe0] sm:$0xff]
        %v2324 = vld [vmem:[#allocation3 + $0xe8] sm:$0xff]
        %v2325 = vld [vmem:[#allocation3 + $0xf0] sm:$0xff]
        %v2326 = vld [vmem:[#allocation3 + $0xf8] sm:$0xff]
        %2327 = vmatprep.subr.mxu0 0.0
        %2328 = vmatpush1.msra.mxu0 %v2295
        %2329 = vmatprep.subr.mxu0 0.0
        %2330 = vmatpush1.msra.mxu0 %v2296
        %2331 = vmatprep.subr.mxu0 0.0
        %2332 = vmatpush1.msra.mxu0 %v2297
        %2333 = vmatprep.subr.mxu0 0.0
        %2334 = vmatpush1.msra.mxu0 %v2298
        %2335 = vmatprep.subr.mxu0 0.0
        %2336 = vmatpush1.msra.mxu0 %v2299
        %2337 = vmatprep.subr.mxu0 0.0
        %2338 = vmatpush1.msra.mxu0 %v2300
        %2339 = vmatprep.subr.mxu0 0.0
        %2340 = vmatpush1.msra.mxu0 %v2301
        %2341 = vmatprep.subr.mxu0 0.0
        %2342 = vmatpush1.msra.mxu0 %v2302
        %2343 = vmatprep.subr.mxu0 0.0
        %2344 = vmatpush1.msra.mxu0 %v2303
        %2345 = vmatprep.subr.mxu0 0.0
        %2346 = vmatpush1.msra.mxu0 %v2304
        %2347 = vmatprep.subr.mxu0 0.0
        %2348 = vmatpush1.msra.mxu0 %v2305
        %2349 = vmatprep.subr.mxu0 0.0
        %2350 = vmatpush1.msra.mxu0 %v2306
        %2351 = vmatprep.subr.mxu0 0.0
        %2352 = vmatpush1.msra.mxu0 %v2307
        %2353 = vmatprep.subr.mxu0 0.0
        %2354 = vmatpush1.msra.mxu0 %v2308
        %2355 = vmatprep.subr.mxu0 0.0
        %2356 = vmatpush1.msra.mxu0 %v2309
        %2357 = vmatprep.subr.mxu0 0.0
        %2358 = vmatpush1.msra.mxu0 %v2310
        %2359 = vmatprep.subr.mxu0 0.0
        %2360 = vmatpush1.msra.mxu0 %v2311
        %2361 = vmatprep.subr.mxu0 0.0
        %2362 = vmatpush1.msra.mxu0 %v2312
        %2363 = vmatprep.subr.mxu0 0.0
        %2364 = vmatpush1.msra.mxu0 %v2313
        %2365 = vmatprep.subr.mxu0 0.0
        %2366 = vmatpush1.msra.mxu0 %v2314
        %2367 = vmatprep.subr.mxu0 0.0
        %2368 = vmatpush1.msra.mxu0 %v2315
        %2369 = vmatprep.subr.mxu0 0.0
        %2370 = vmatpush1.msra.mxu0 %v2316
        %2371 = vmatprep.subr.mxu0 0.0
        %2372 = vmatpush1.msra.mxu0 %v2317
        %2373 = vmatprep.subr.mxu0 0.0
        %2374 = vmatpush1.msra.mxu0 %v2318
        %2375 = vmatprep.subr.mxu0 0.0
        %2376 = vmatpush1.msra.mxu0 %v2319
        %2377 = vmatprep.subr.mxu0 0.0
        %2378 = vmatpush1.msra.mxu0 %v2320
        %2379 = vmatprep.subr.mxu0 0.0
        %2380 = vmatpush1.msra.mxu0 %v2321
        %2381 = vmatprep.subr.mxu0 0.0
        %2382 = vmatpush1.msra.mxu0 %v2322
        %2383 = vmatprep.subr.mxu0 0.0
        %2384 = vmatpush1.msra.mxu0 %v2323
        %2385 = vmatprep.subr.mxu0 0.0
        %2386 = vmatpush1.msra.mxu0 %v2324
        %2387 = vmatprep.subr.mxu0 0.0
        %2388 = vmatpush1.msra.mxu0 %v2325
        %2389 = vmatprep.subr.mxu0 0.0
        %2390 = vmatpush1.msra.mxu0 %v2326
        %2391 = vmatprep.mubr.f32.mxu0 %v2249
        %2392 = vmatmul.mubr.f32.gmra.mrb[0].mxu0 %v2248
        %v2393 = vpop.f32.mrb[0].mxu0
        %v2394 = vadd.f32 0.0, %v2393
        %v2395 = vpop.f32.mrb[0].mxu0
        %2396 = vmatprep.mubr.f32.mxu0 %v2252
        %2397 = vmatmul.mubr.f32.gmra.mrb[0].mxu0 %v2251
        %v2398 = vpop.f32.mrb[0].mxu0
        %v2399 = vadd.f32 0.0, %v2398
        %v2400 = vpop.f32.mrb[0].mxu0
        %2401 = vmatprep.mubr.f32.mxu0 %v2255
        %2402 = vmatmul.mubr.f32.gmra.mrb[0].mxu0 %v2254
        %v2403 = vpop.f32.mrb[0].mxu0
        %v2404 = vadd.f32 0.0, %v2403
        %v2405 = vpop.f32.mrb[0].mxu0
        %2406 = vmatprep.mubr.f32.mxu0 %v2258
        %2407 = vmatmul.mubr.f32.gmra.mrb[0].mxu0 %v2257
        %v2408 = vpop.f32.mrb[0].mxu0
        %v2409 = vadd.f32 0.0, %v2408
        %v2410 = vpop.f32.mrb[0].mxu0
        %2411 = vmatprep.mubr.f32.mxu0 %v2261
        %2412 = vmatmul.mubr.f32.gmra.mrb[0].mxu0 %v2260
        %v2413 = vpop.f32.mrb[0].mxu0
        %v2414 = vadd.f32 0.0, %v2413
        %v2415 = vpop.f32.mrb[0].mxu0
        %2416 = vmatprep.mubr.f32.mxu0 %v2264
        %2417 = vmatmul.mubr.f32.gmra.mrb[0].mxu0 %v2263
        %v2418 = vpop.f32.mrb[0].mxu0
        %v2419 = vadd.f32 0.0, %v2418
        %v2420 = vpop.f32.mrb[0].mxu0
        %2421 = vmatprep.mubr.f32.mxu0 %v2267
        %2422 = vmatmul.mubr.f32.gmra.mrb[0].mxu0 %v2266
        %v2423 = vpop.f32.mrb[0].mxu0
        %v2424 = vadd.f32 0.0, %v2423
        %v2425 = vpop.f32.mrb[0].mxu0
        %2426 = vmatprep.mubr.f32.mxu0 %v2270
        %2427 = vmatmul.mubr.f32.gmra.mrb[0].mxu0 %v2269
        %v2428 = vpop.f32.mrb[0].mxu0
        %v2429 = vadd.f32 0.0, %v2428
        %v2430 = vpop.f32.mrb[0].mxu0
        %2431 = vmatprep.mubr.f32.mxu0 %v2273
        %2432 = vmatmul.mubr.f32.gmra.mrb[0].mxu0 %v2272
        %v2433 = vpop.f32.mrb[0].mxu0
        %v2434 = vadd.f32 0.0, %v2433
        %v2435 = vpop.f32.mrb[0].mxu0
        %2436 = vmatprep.mubr.f32.mxu0 %v2276
        %2437 = vmatmul.mubr.f32.gmra.mrb[0].mxu0 %v2275
        %v2438 = vpop.f32.mrb[0].mxu0
        %v2439 = vadd.f32 0.0, %v2438
        %v2440 = vpop.f32.mrb[0].mxu0
        %2441 = vmatprep.mubr.f32.mxu0 %v2279
        %2442 = vmatmul.mubr.f32.gmra.mrb[0].mxu0 %v2278
        %v2443 = vpop.f32.mrb[0].mxu0
        %v2444 = vadd.f32 0.0, %v2443
        %v2445 = vpop.f32.mrb[0].mxu0
        %2446 = vmatprep.mubr.f32.mxu0 %v2282
        %2447 = vmatmul.mubr.f32.gmra.mrb[0].mxu0 %v2281
        %v2448 = vpop.f32.mrb[0].mxu0
        %v2449 = vadd.f32 0.0, %v2448
        %v2450 = vpop.f32.mrb[0].mxu0
        %2451 = vmatprep.mubr.f32.mxu0 %v2285
        %2452 = vmatmul.mubr.f32.gmra.mrb[0].mxu0 %v2284
        %v2453 = vpop.f32.mrb[0].mxu0
        %v2454 = vadd.f32 0.0, %v2453
        %v2455 = vpop.f32.mrb[0].mxu0
        %2456 = vmatprep.mubr.f32.mxu0 %v2288
        %2457 = vmatmul.mubr.f32.gmra.mrb[0].mxu0 %v2287
        %v2458 = vpop.f32.mrb[0].mxu0
        %v2459 = vadd.f32 0.0, %v2458
        %v2460 = vpop.f32.mrb[0].mxu0
        %2461 = vmatprep.mubr.f32.mxu0 %v2291
        %2462 = vmatmul.mubr.f32.gmra.mrb[0].mxu0 %v2290
        %v2463 = vpop.f32.mrb[0].mxu0
        %v2464 = vadd.f32 0.0, %v2463
        %v2465 = vpop.f32.mrb[0].mxu0
        %2466 = vmatprep.mubr.f32.mxu0 %v2294
        %2467 = vmatmul.mubr.f32.gmra.mrb[0].mxu0 %v2293
        %v2468 = vpop.f32.mrb[0].mxu0
        %v2469 = vadd.f32 0.0, %v2468
        %v2470 = vpop.f32.mrb[0].mxu0
        %2471 = vdwg.mxu0
        %2472 = vst [vmem:[%s535] sm:$0xff] %v2394
        %2473 = vst [vmem:[%s535 + $0x8] sm:$0xff] %v2399
        %2474 = vst [vmem:[%s535 + $0x10] sm:$0xff] %v2404
        %2475 = vst [vmem:[%s535 + $0x18] sm:$0xff] %v2409
        %2476 = vst [vmem:[%s535 + $0x20] sm:$0xff] %v2414
        %2477 = vst [vmem:[%s535 + $0x28] sm:$0xff] %v2419
        %2478 = vst [vmem:[%s535 + $0x30] sm:$0xff] %v2424
        %2479 = vst [vmem:[%s535 + $0x38] sm:$0xff] %v2429
        %2480 = vst [vmem:[%s535 + $0x40] sm:$0xff] %v2434
        %2481 = vst [vmem:[%s535 + $0x48] sm:$0xff] %v2439
        %2482 = vst [vmem:[%s535 + $0x50] sm:$0xff] %v2444
        %2483 = vst [vmem:[%s535 + $0x58] sm:$0xff] %v2449
        %2484 = vst [vmem:[%s535 + $0x60] sm:$0xff] %v2454
        %2485 = vst [vmem:[%s535 + $0x68] sm:$0xff] %v2459
        %2486 = vst [vmem:[%s535 + $0x70] sm:$0xff] %v2464
        %2487 = vst [vmem:[%s535 + $0x78] sm:$0xff] %v2469
        %s2488 = sand.u32 %s286, 1
        %s2489 = scalar_lea.sflag [#allocation6], %s2488
        %s2490 = sand.u32 %s286, 1
        %s2491 = smul.addr %s2490, 128
        %s2492 = scalar_lea.vmem [#allocation15], %s2491
        // Predicated region
        $region85: #{tpu_custom_call.1} parent=55 // pred_check
          %p2493 = pneg %p296
        $region86: #{tpu_custom_call.1} parent=55 // pred_check_branch
          %2495 = sbr.rel (%p2493) target = $region88
        $region87: #{tpu_custom_call.1} parent=55 // pred_region
          %s2496 = smul.u32 16, %s38
          %s2498 = ssub.s32 2048, 2048
          %2499 = vsyncadd %s2489, %s2498
          %s2500 = smul.addr %s2496, 2
          %s2501 = sadd.s32 %s37, %s2500
          %s2502 = smul.addr %s36, 64
          %s2503 = sadd.s32 %s2501, %s2502
          %s2504 = smul.addr %s2503, 128
          %s2505 = scalar_lea.hbm %s9, %s2504
          %s2506 = sshll.u32 %s2492, 4
          %s2507 = int_to_ptr.vmem [resolvable:$true] %s2506
          %2512 = dma.vmem_to_hbm [thread:$0]  %s2507, 2048, %s2505, %s2489, 128, 256, 8
        $region88: #{tpu_custom_call.1} parent=55 // pred_fallthru
          _
      $region56: #{tpu_custom_call.1} parent=5 // pred_fallthru
        _
      %p2513 = scmp.le.s32.totalorder 2, %s26
      // Predicated region
      $region89: #{tpu_custom_call.1} parent=5 // pred_check
        %p2514 = pneg %p2513
      $region90: #{tpu_custom_call.1} parent=5 // pred_check_branch
        %2516 = sbr.rel (%p2514) target = $region92
      $region91: #{tpu_custom_call.1} parent=5 // pred_region
        %s2517 = ssub.s32 %s26, 2
        // Predicated region
        $region93: #{tpu_custom_call.1} parent=91 // pred_check
          %p2518 = pneg %p302
        $region94: #{tpu_custom_call.1} parent=91 // pred_check_branch
          %2520 = sbr.rel (%p2518) target = $region96
        $region95: #{tpu_custom_call.1} parent=91 // pred_region
          %s2521 = sand.u32 %s287, 1
          %s2522 = scalar_lea.sflag [#allocation6], %s2521
          %s2523 = sand.u32 %s287, 1
          %s2524 = smul.addr %s2523, 128
          %s2525 = scalar_lea.vmem [#allocation15], %s2524
          %2526 = dma.done %s2522, 2048
        $region96: #{tpu_custom_call.1} parent=91 // pred_fallthru
          _
      $region92: #{tpu_custom_call.1} parent=5 // pred_fallthru
        _
    $region6: #{tpu_custom_call.1} parent=1 // loop_footer
      %s30 = sadd.s32 1, %s26
    $region7: #{tpu_custom_call.1} parent=1 // loop_footer_branch
      %25 = sbr.rel target = $region3
    $region8: #{tpu_custom_call.1} parent=1 // loop_exit
      _
    %2527 = vsyncpa [#allocation5], 1
    %s2528 = scalar_lea.sflag [#allocation5], 1
    %2529 = vsyncpa %s2528, 1
    %2530 = vsyncpa [#allocation8], 1
    %s2531 = scalar_lea.sflag [#allocation8], 1
    %2532 = vsyncpa %s2531, 1
    %2533 = vsyncpa [#allocation11], 1
    %s2534 = scalar_lea.sflag [#allocation11], 1
    %2535 = vsyncpa %s2534, 1
    %2536 = vsyncpa [#allocation14], 1
    %2537 = vsyncpa [#allocation6], 1
    %s2538 = scalar_lea.sflag [#allocation6], 1
    %2539 = vsyncpa %s2538, 1

</llo_original>
